<compile_context>
chip_gen: v6e
topology: v6e:2x2x1
jax: 0.10.0
libtpu: 0.0.40
codegen_flags: <defaults>
</compile_context>

<pallas_src>
import functools

import jax
import jax.numpy as jnp
from jax import lax
from jax.experimental import pallas as pl
from jax.experimental.pallas import tpu as pltpu


# ----------------------------- configuration -------------------------------
NUM_VOCAB = 50
EMBED_DIM = 16
HIDDEN = 32
NUM_LAYERS = 2
NUM_LABELS = 4
PADDING_IDX = 0
BATCH = 2
SEQ = 8
# TODO(synk): nn.LSTM dropout only applies in training mode; forward here is
# implemented in eval semantics (no dropout between layers).


# ----------------------------- Pallas kernel --------------------------------
def fused_model_kernel(
    tok_ref,        # (T*B, 2) int32: col0 = token at time t, col1 = token at time T-1-t
    table0_ref,     # (2V, 8H) bf16  : folded embedding + layer-0 input weights
    b0_ref,         # (1, 8H) f32
    whh0_ref,       # (2H, 8H) bf16  : block-diag recurrence weights, layer 0
    w1_ref,         # (4H, 8H) bf16  : layer-1 input weights (row-permuted for scratch layout)
    b1_ref,         # (1, 8H) f32
    whh1_ref,       # (2H, 8H) bf16
    fcw_ref,        # (2H, NUM_LABELS) bf16
    fcb_ref,        # (1, NUM_LABELS) f32
    out_ref,        # (B, NUM_LABELS) f32
    y0_scr,         # (T*B, 4H) f32: [h0_f(t), h0_b(T-1-t), h0_f(T-1-t), h0_b(t)] per row t
    *, T, B, H, V,
):
    TB = T * B
    H2 = 2 * H   # 64 : width of merged fwd|bwd hidden/cell and of each gate-cat
    G = 8 * H    # 256: merged gate width

    # ---- layer-0 input projection via folded embedding (one-hot matmul, one MXU pass) ----
    ids = tok_ref[...]                                              # (TB, 2) int32
    iota = lax.broadcasted_iota(jnp.int32, (TB, 2 * V), 1)
    one_hot = jnp.logical_or(iota == ids[:, 0:1],                   # fwd token at time t
                             iota == (ids[:, 1:2] + V)              # bwd token at time T-1-t
                             ).astype(jnp.bfloat16)                 # (TB, 2V)
    gx0 = jnp.dot(one_hot, table0_ref[...],
                  preferred_element_type=jnp.float32) + b0_ref[...]  # (TB, 8H) f32

    def run_layer(gx, whh_bd, write_outputs):
        """Merged fwd+bwd recurrence.  gx row t holds fwd gates for time t and
        bwd gates for time T-1-t, columns [i_f,i_b,f_f,f_b,o_f,o_b,g_f,g_b]."""
        h = jnp.zeros((B, H2), jnp.float32)   # [h_f | h_b]
        c = jnp.zeros((B, H2), jnp.float32)   # [c_f | c_b]
        h_b_at_last_time = None               # bwd hidden at time T-1 (iteration t=0)
        for t in range(T):                    # fully unrolled, T static
            # One 256-wide block-diagonal MXU pass covers both directions.
            g = gx[t * B:(t + 1) * B, :] + jnp.dot(
                h.astype(jnp.bfloat16), whh_bd, preferred_element_type=jnp.float32)
            # Full-width EUP launches, slice results afterwards (extra lanes are free).
            s = jax.nn.sigmoid(g)             # (B, 8H)
            u = jnp.tanh(g)                   # (B, 8H)
            i_g = s[:, 0:H2]                  # [i_f | i_b]
            f_g = s[:, H2:2 * H2]             # [f_f | f_b]
            o_g = s[:, 2 * H2:3 * H2]         # [o_f | o_b]
            g_g = u[:, 3 * H2:G]              # [g_f | g_b]
            c = f_g * c + i_g * g_g
            h = o_g * jnp.tanh(c)
            if t == 0:
                h_b_at_last_time = h[:, H:H2]
            if write_outputs:
                tb = T - 1 - t
                # Off the h/c dependence chain (hidden under the serial MXU/EUP work).
                y0_scr[t * B:(t + 1) * B, 0:H2] = h          # [h_f(t)    , h_b(T-1-t)]
                y0_scr[tb * B:(tb + 1) * B, H2:2 * H2] = h   # [h_f(t)    , h_b(T-1-t)] at row T-1-t
        return h, h_b_at_last_time

    # ---- layer 0 ----
    run_layer(gx0, whh0_ref[...], True)

    # ---- layer-1 input projection: single matmul over the augmented scratch ----
    gx1 = jnp.dot(y0_scr[...].astype(jnp.bfloat16), w1_ref[...],
                  preferred_element_type=jnp.float32) + b1_ref[...]  # (TB, 8H)

    # ---- layer 1 (only the last-time-step output is needed) ----
    h1, h1_b_last = run_layer(gx1, whh1_ref[...], False)
    last = jnp.concatenate([h1[:, 0:H], h1_b_last], axis=1)          # (B, 2H) == out[:, -1, :]

    logits = jnp.dot(last.astype(jnp.bfloat16), fcw_ref[...],
                     preferred_element_type=jnp.float32) + fcb_ref[...]
    out_ref[...] = jax.nn.sigmoid(logits).astype(out_ref.dtype)


# --------------------------- one-time param prep -----------------------------
def _place_gates(w, is_bwd):
    """Place PyTorch-ordered (i,f,g,o) gate columns of one direction into the merged
    8H layout [i_f,i_b,f_f,f_b,o_f,o_b,g_f,g_b], zeros in the other direction's slots."""
    i, f, g, o = jnp.split(w, 4, axis=-1)
    z = jnp.zeros_like(i)
    blocks = [z, i, z, f, z, o, z, g] if is_bwd else [i, z, f, z, o, z, g, z]
    return jnp.concatenate(blocks, axis=-1)


def prepare_params(params):
    """One-time repacking: embedding fold, block-diag recurrence weights, column/row
    permutations and bf16 casts.  Keeps all per-call wrapper work out of the hot path."""
    H = HIDDEN
    emb = params["embedding"]                                        # (V, E)
    (wih0f, whh0f, b0f), (wih0b, whh0b, b0b) = params["lstm"][0]
    (wih1f, whh1f, b1f), (wih1b, whh1b, b1b) = params["lstm"][1]

    # Layer 0: fold embedding into the input projection. rows 0:V -> fwd token,
    # rows V:2V -> time-reversed token.
    table0 = jnp.concatenate([_place_gates(emb @ wih0f, False),
                              _place_gates(emb @ wih0b, True)], axis=0)   # (2V, 8H)
    whh0 = jnp.concatenate([_place_gates(whh0f, False),
                            _place_gates(whh0b, True)], axis=0)           # (2H, 8H)
    b0 = _place_gates(b0f, False) + _place_gates(b0b, True)               # (1, 8H)

    # Layer 1: scratch row layout is [h0_f(t), h0_b(T-1-t), h0_f(T-1-t), h0_b(t)],
    # so permute wih1 rows accordingly (fwd gates consume y0(t), bwd gates y0(T-1-t)).
    w1 = jnp.concatenate([_place_gates(wih1f[0:H], False),
                          _place_gates(wih1b[H:2 * H], True),
                          _place_gates(wih1b[0:H], True),
                          _place_gates(wih1f[H:2 * H], False)], axis=0)   # (4H, 8H)
    whh1 = jnp.concatenate([_place_gates(whh1f, False),
                            _place_gates(whh1b, True)], axis=0)           # (2H, 8H)
    b1 = _place_gates(b1f, False) + _place_gates(b1b, True)               # (1, 8H)

    return {
        "table0": table0.astype(jnp.bfloat16),
        "b0": b0.astype(jnp.float32),
        "whh0": whh0.astype(jnp.bfloat16),
        "w1": w1.astype(jnp.bfloat16),
        "b1": b1.astype(jnp.float32),
        "whh1": whh1.astype(jnp.bfloat16),
        "fc_w": params["fc_w"].astype(jnp.bfloat16),
        "fc_b": params["fc_b"].astype(jnp.float32),
    }


# ------------------------------- wrapper -------------------------------------
def model_forward(prep, input_x):
    """input_x: (B, T) int32 token ids  ->  (B, NUM_LABELS) sigmoid probs."""
    B, T = input_x.shape
    H = HIDDEN
    V = NUM_VOCAB

    # Time-major token ids, plus the time-reversed ids for the backward direction
    # (tiny, data-dependent -> must stay per-call).
    tok_tm = jnp.transpose(input_x, (1, 0)).reshape(T * B)
    tok_rev = jnp.transpose(input_x[:, ::-1], (1, 0)).reshape(T * B)
    tok_aug = jnp.stack([tok_tm, tok_rev], axis=1).astype(jnp.int32)       # (T*B, 2)

    kernel = functools.partial(fused_model_kernel, T=T, B=B, H=H, V=V)
    vmem = pl.BlockSpec(memory_space=pltpu.MemorySpace.VMEM)

    return pl.pallas_call(
        kernel,
        out_shape=jax.ShapeDtypeStruct((B, NUM_LABELS), jnp.float32),
        in_specs=[vmem] * 9,
        out_specs=vmem,
        scratch_shapes=[
            pltpu.VMEM((T * B, 4 * H), jnp.float32),   # layer-0 outputs (normal + reversed views)
        ],
    )(tok_aug, prep["table0"], prep["b0"], prep["whh0"],
      prep["w1"], prep["b1"], prep["whh1"], prep["fc_w"], prep["fc_b"])


def init_params(key):
    """Deterministic synthetic parameters matching the PyTorch module's shapes."""
    params = {}
    k_emb, key = jax.random.split(key)
    emb = 0.1 * jax.random.normal(k_emb, (NUM_VOCAB, EMBED_DIM), jnp.float32)
    emb = emb.at[PADDING_IDX].set(0.0)  # padding_idx row is zero-initialized
    params["embedding"] = emb

    layers = []
    for layer in range(NUM_LAYERS):
        in_dim = EMBED_DIM if layer == 0 else 2 * HIDDEN
        dirs = []
        for _ in range(2):  # forward, backward
            key, k1, k2, k3 = jax.random.split(key, 4)
            w_ih = 0.1 * jax.random.normal(k1, (in_dim, 4 * HIDDEN), jnp.float32)
            w_hh = 0.1 * jax.random.normal(k2, (HIDDEN, 4 * HIDDEN), jnp.float32)
            # Combined bias (b_ih + b_hh) as one (1, 4H) vector; PyTorch gate order (i,f,g,o).
            # NOTE: when loading real PyTorch weights, pass b_ih + b_hh here.
            b = 0.1 * jax.random.normal(k3, (1, 4 * HIDDEN), jnp.float32)
            dirs.append((w_ih, w_hh, b))
        layers.append(dirs)
    params["lstm"] = layers

    key, k_w, k_b = jax.random.split(key, 3)
    params["fc_w"] = 0.1 * jax.random.normal(k_w, (2 * HIDDEN, NUM_LABELS), jnp.float32)
    params["fc_b"] = 0.1 * jax.random.normal(k_b, (1, NUM_LABELS), jnp.float32)
    return params


if __name__ == "__main__":
    key = jax.random.PRNGKey(0)
    params = init_params(key)
    prep = prepare_params(params)   # one-time weight repacking (outside the per-call path)

    k_in = jax.random.fold_in(key, 123)
    input_x = jax.random.randint(k_in, (BATCH, SEQ), 1, NUM_VOCAB, dtype=jnp.int32)

    pred = jax.jit(model_forward)(prep, input_x)
    jax.block_until_ready(pred)
    assert pred.shape == (BATCH, NUM_LABELS)
    print("KERNEL_OK")
</pallas_src>

<mosaic_0001>
module attributes {stable_mosaic.version = 11 : i64} {
  func.func @fused_model_kernel(%arg0: memref<16x2xi32, #tpu.memory_space<vmem>>, %arg1: memref<100x256xbf16, #tpu.memory_space<vmem>>, %arg2: memref<1x256xf32, #tpu.memory_space<vmem>>, %arg3: memref<64x256xbf16, #tpu.memory_space<vmem>>, %arg4: memref<128x256xbf16, #tpu.memory_space<vmem>>, %arg5: memref<1x256xf32, #tpu.memory_space<vmem>>, %arg6: memref<64x256xbf16, #tpu.memory_space<vmem>>, %arg7: memref<64x4xbf16, #tpu.memory_space<vmem>>, %arg8: memref<1x4xf32, #tpu.memory_space<vmem>>, %arg9: memref<2x4xf32, #tpu.memory_space<vmem>>, %arg10: memref<16x128xf32, #tpu.memory_space<vmem>>) attributes {dimension_semantics = [], scalar_prefetch = 0 : i64, scratch_operands = 1 : i64, tpu.core_type = #tpu.core_type<tc>} {
    %c0 = arith.constant 0 : index
    %c0_0 = arith.constant 0 : index
    %0 = vector.load %arg0[%c0, %c0_0] : memref<16x2xi32, #tpu.memory_space<vmem>>, vector<16x2xi32>
    %1 = tpu.iota {dimensions = array<i32: 1>} : vector<16x100xi32>
    %2 = vector.extract_strided_slice %0 {offsets = [0, 0], sizes = [16, 1], strides = [1, 1]} : vector<16x2xi32> to vector<16x1xi32>
    %3 = vector.broadcast %2 : vector<16x1xi32> to vector<16x100xi32>
    %4 = arith.cmpi eq, %1, %3 : vector<16x100xi32>
    %5 = vector.extract_strided_slice %0 {offsets = [0, 1], sizes = [16, 1], strides = [1, 1]} : vector<16x2xi32> to vector<16x1xi32>
    %c50_i32 = arith.constant 50 : i32
    %6 = vector.broadcast %c50_i32 : i32 to vector<16x1xi32>
    %7 = arith.addi %5, %6 : vector<16x1xi32>
    %8 = vector.broadcast %7 : vector<16x1xi32> to vector<16x100xi32>
    %9 = arith.cmpi eq, %1, %8 : vector<16x100xi32>
    %10 = arith.ori %4, %9 : vector<16x100xi1>
    %11 = arith.extui %10 : vector<16x100xi1> to vector<16x100xi32>
    %12 = arith.sitofp %11 : vector<16x100xi32> to vector<16x100xf32>
    %13 = arith.truncf %12 : vector<16x100xf32> to vector<16x100xbf16>
    %c0_1 = arith.constant 0 : index
    %c0_2 = arith.constant 0 : index
    %14 = vector.load %arg1[%c0_1, %c0_2] : memref<100x256xbf16, #tpu.memory_space<vmem>>, vector<100x256xbf16>
    %cst = arith.constant dense<0.000000e+00> : vector<16x256xf32>
    %15 = tpu.matmul %13, %14, %cst {dimension_numbers = #tpu.dot_dimension_numbers<[1], [0], [0], [1], [0, 0, 1, 1], [], []>} : vector<16x100xbf16>, vector<100x256xbf16>, vector<16x256xf32> -> vector<16x256xf32>
    %c0_3 = arith.constant 0 : index
    %c0_4 = arith.constant 0 : index
    %16 = vector.load %arg2[%c0_3, %c0_4] : memref<1x256xf32, #tpu.memory_space<vmem>>, vector<1x256xf32>
    %17 = vector.broadcast %16 : vector<1x256xf32> to vector<16x256xf32>
    %18 = arith.addf %15, %17 : vector<16x256xf32>
    %c0_5 = arith.constant 0 : index
    %c0_6 = arith.constant 0 : index
    %19 = vector.load %arg3[%c0_5, %c0_6] : memref<64x256xbf16, #tpu.memory_space<vmem>>, vector<64x256xbf16>
    %cst_7 = arith.constant 0.000000e+00 : f32
    %20 = vector.broadcast %cst_7 : f32 to vector<2x64xf32>
    %cst_8 = arith.constant 0.000000e+00 : f32
    %21 = vector.broadcast %cst_8 : f32 to vector<2x64xf32>
    %22 = vector.extract_strided_slice %18 {offsets = [0, 0], sizes = [2, 256], strides = [1, 1]} : vector<16x256xf32> to vector<2x256xf32>
    %23 = arith.truncf %20 : vector<2x64xf32> to vector<2x64xbf16>
    %cst_9 = arith.constant dense<0.000000e+00> : vector<2x256xf32>
    %24 = tpu.matmul %23, %19, %cst_9 {dimension_numbers = #tpu.dot_dimension_numbers<[1], [0], [0], [1], [0, 0, 1, 1], [], []>} : vector<2x64xbf16>, vector<64x256xbf16>, vector<2x256xf32> -> vector<2x256xf32>
    %25 = arith.addf %22, %24 : vector<2x256xf32>
    %26 = arith.negf %25 : vector<2x256xf32>
    %27 = math.exp %26 : vector<2x256xf32>
    %cst_10 = arith.constant 1.000000e+00 : f32
    %28 = vector.broadcast %cst_10 : f32 to vector<2x256xf32>
    %29 = arith.addf %28, %27 : vector<2x256xf32>
    %30 = arith.divf %28, %29 : vector<2x256xf32>
    %31 = math.tanh %25 : vector<2x256xf32>
    %32 = vector.extract_strided_slice %30 {offsets = [0, 0], sizes = [2, 64], strides = [1, 1]} : vector<2x256xf32> to vector<2x64xf32>
    %33 = vector.extract_strided_slice %30 {offsets = [0, 64], sizes = [2, 64], strides = [1, 1]} : vector<2x256xf32> to vector<2x64xf32>
    %34 = vector.extract_strided_slice %30 {offsets = [0, 128], sizes = [2, 64], strides = [1, 1]} : vector<2x256xf32> to vector<2x64xf32>
    %35 = vector.extract_strided_slice %31 {offsets = [0, 192], sizes = [2, 64], strides = [1, 1]} : vector<2x256xf32> to vector<2x64xf32>
    %36 = arith.mulf %33, %21 : vector<2x64xf32>
    %37 = arith.mulf %32, %35 : vector<2x64xf32>
    %38 = arith.addf %36, %37 : vector<2x64xf32>
    %39 = math.tanh %38 : vector<2x64xf32>
    %40 = arith.mulf %34, %39 : vector<2x64xf32>
    %c0_11 = arith.constant 0 : index
    %c0_12 = arith.constant 0 : index
    %41 = vector.load %arg10[%c0_11, %c0_12] : memref<16x128xf32, #tpu.memory_space<vmem>>, vector<2x64xf32>
    tpu.vector_store %arg10[%c0_11, %c0_12], %40 {strides = array<i32>} : memref<16x128xf32, #tpu.memory_space<vmem>>, vector<2x64xf32>,
    %c14 = arith.constant 14 : index
    %c64 = arith.constant 64 : index
    %42 = vector.load %arg10[%c14, %c64] : memref<16x128xf32, #tpu.memory_space<vmem>>, vector<2x64xf32>
    tpu.vector_store %arg10[%c14, %c64], %40 {strides = array<i32>} : memref<16x128xf32, #tpu.memory_space<vmem>>, vector<2x64xf32>,
    %43 = vector.extract_strided_slice %18 {offsets = [2, 0], sizes = [2, 256], strides = [1, 1]} : vector<16x256xf32> to vector<2x256xf32>
    %44 = arith.truncf %40 : vector<2x64xf32> to vector<2x64xbf16>
    %cst_13 = arith.constant dense<0.000000e+00> : vector<2x256xf32>
    %45 = tpu.matmul %44, %19, %cst_13 {dimension_numbers = #tpu.dot_dimension_numbers<[1], [0], [0], [1], [0, 0, 1, 1], [], []>} : vector<2x64xbf16>, vector<64x256xbf16>, vector<2x256xf32> -> vector<2x256xf32>
    %46 = arith.addf %43, %45 : vector<2x256xf32>
    %47 = arith.negf %46 : vector<2x256xf32>
    %48 = math.exp %47 : vector<2x256xf32>
    %cst_14 = arith.constant 1.000000e+00 : f32
    %49 = vector.broadcast %cst_14 : f32 to vector<2x256xf32>
    %50 = arith.addf %49, %48 : vector<2x256xf32>
    %51 = arith.divf %49, %50 : vector<2x256xf32>
    %52 = math.tanh %46 : vector<2x256xf32>
    %53 = vector.extract_strided_slice %51 {offsets = [0, 0], sizes = [2, 64], strides = [1, 1]} : vector<2x256xf32> to vector<2x64xf32>
    %54 = vector.extract_strided_slice %51 {offsets = [0, 64], sizes = [2, 64], strides = [1, 1]} : vector<2x256xf32> to vector<2x64xf32>
    %55 = vector.extract_strided_slice %51 {offsets = [0, 128], sizes = [2, 64], strides = [1, 1]} : vector<2x256xf32> to vector<2x64xf32>
    %56 = vector.extract_strided_slice %52 {offsets = [0, 192], sizes = [2, 64], strides = [1, 1]} : vector<2x256xf32> to vector<2x64xf32>
    %57 = arith.mulf %54, %38 : vector<2x64xf32>
    %58 = arith.mulf %53, %56 : vector<2x64xf32>
    %59 = arith.addf %57, %58 : vector<2x64xf32>
    %60 = math.tanh %59 : vector<2x64xf32>
    %61 = arith.mulf %55, %60 : vector<2x64xf32>
    %c2 = arith.constant 2 : index
    %c0_15 = arith.constant 0 : index
    %62 = vector.load %arg10[%c2, %c0_15] : memref<16x128xf32, #tpu.memory_space<vmem>>, vector<2x64xf32>
    tpu.vector_store %arg10[%c2, %c0_15], %61 {strides = array<i32>} : memref<16x128xf32, #tpu.memory_space<vmem>>, vector<2x64xf32>,
    %c12 = arith.constant 12 : index
    %c64_16 = arith.constant 64 : index
    %63 = vector.load %arg10[%c12, %c64_16] : memref<16x128xf32, #tpu.memory_space<vmem>>, vector<2x64xf32>
    tpu.vector_store %arg10[%c12, %c64_16], %61 {strides = array<i32>} : memref<16x128xf32, #tpu.memory_space<vmem>>, vector<2x64xf32>,
    %64 = vector.extract_strided_slice %18 {offsets = [4, 0], sizes = [2, 256], strides = [1, 1]} : vector<16x256xf32> to vector<2x256xf32>
    %65 = arith.truncf %61 : vector<2x64xf32> to vector<2x64xbf16>
    %cst_17 = arith.constant dense<0.000000e+00> : vector<2x256xf32>
    %66 = tpu.matmul %65, %19, %cst_17 {dimension_numbers = #tpu.dot_dimension_numbers<[1], [0], [0], [1], [0, 0, 1, 1], [], []>} : vector<2x64xbf16>, vector<64x256xbf16>, vector<2x256xf32> -> vector<2x256xf32>
    %67 = arith.addf %64, %66 : vector<2x256xf32>
    %68 = arith.negf %67 : vector<2x256xf32>
    %69 = math.exp %68 : vector<2x256xf32>
    %cst_18 = arith.constant 1.000000e+00 : f32
    %70 = vector.broadcast %cst_18 : f32 to vector<2x256xf32>
    %71 = arith.addf %70, %69 : vector<2x256xf32>
    %72 = arith.divf %70, %71 : vector<2x256xf32>
    %73 = math.tanh %67 : vector<2x256xf32>
    %74 = vector.extract_strided_slice %72 {offsets = [0, 0], sizes = [2, 64], strides = [1, 1]} : vector<2x256xf32> to vector<2x64xf32>
    %75 = vector.extract_strided_slice %72 {offsets = [0, 64], sizes = [2, 64], strides = [1, 1]} : vector<2x256xf32> to vector<2x64xf32>
    %76 = vector.extract_strided_slice %72 {offsets = [0, 128], sizes = [2, 64], strides = [1, 1]} : vector<2x256xf32> to vector<2x64xf32>
    %77 = vector.extract_strided_slice %73 {offsets = [0, 192], sizes = [2, 64], strides = [1, 1]} : vector<2x256xf32> to vector<2x64xf32>
    %78 = arith.mulf %75, %59 : vector<2x64xf32>
    %79 = arith.mulf %74, %77 : vector<2x64xf32>
    %80 = arith.addf %78, %79 : vector<2x64xf32>
    %81 = math.tanh %80 : vector<2x64xf32>
    %82 = arith.mulf %76, %81 : vector<2x64xf32>
    %c4 = arith.constant 4 : index
    %c0_19 = arith.constant 0 : index
    %83 = vector.load %arg10[%c4, %c0_19] : memref<16x128xf32, #tpu.memory_space<vmem>>, vector<2x64xf32>
    tpu.vector_store %arg10[%c4, %c0_19], %82 {strides = array<i32>} : memref<16x128xf32, #tpu.memory_space<vmem>>, vector<2x64xf32>,
    %c10 = arith.constant 10 : index
    %c64_20 = arith.constant 64 : index
    %84 = vector.load %arg10[%c10, %c64_20] : memref<16x128xf32, #tpu.memory_space<vmem>>, vector<2x64xf32>
    tpu.vector_store %arg10[%c10, %c64_20], %82 {strides = array<i32>} : memref<16x128xf32, #tpu.memory_space<vmem>>, vector<2x64xf32>,
    %85 = vector.extract_strided_slice %18 {offsets = [6, 0], sizes = [2, 256], strides = [1, 1]} : vector<16x256xf32> to vector<2x256xf32>
    %86 = arith.truncf %82 : vector<2x64xf32> to vector<2x64xbf16>
    %cst_21 = arith.constant dense<0.000000e+00> : vector<2x256xf32>
    %87 = tpu.matmul %86, %19, %cst_21 {dimension_numbers = #tpu.dot_dimension_numbers<[1], [0], [0], [1], [0, 0, 1, 1], [], []>} : vector<2x64xbf16>, vector<64x256xbf16>, vector<2x256xf32> -> vector<2x256xf32>
    %88 = arith.addf %85, %87 : vector<2x256xf32>
    %89 = arith.negf %88 : vector<2x256xf32>
    %90 = math.exp %89 : vector<2x256xf32>
    %cst_22 = arith.constant 1.000000e+00 : f32
    %91 = vector.broadcast %cst_22 : f32 to vector<2x256xf32>
    %92 = arith.addf %91, %90 : vector<2x256xf32>
    %93 = arith.divf %91, %92 : vector<2x256xf32>
    %94 = math.tanh %88 : vector<2x256xf32>
    %95 = vector.extract_strided_slice %93 {offsets = [0, 0], sizes = [2, 64], strides = [1, 1]} : vector<2x256xf32> to vector<2x64xf32>
    %96 = vector.extract_strided_slice %93 {offsets = [0, 64], sizes = [2, 64], strides = [1, 1]} : vector<2x256xf32> to vector<2x64xf32>
    %97 = vector.extract_strided_slice %93 {offsets = [0, 128], sizes = [2, 64], strides = [1, 1]} : vector<2x256xf32> to vector<2x64xf32>
    %98 = vector.extract_strided_slice %94 {offsets = [0, 192], sizes = [2, 64], strides = [1, 1]} : vector<2x256xf32> to vector<2x64xf32>
    %99 = arith.mulf %96, %80 : vector<2x64xf32>
    %100 = arith.mulf %95, %98 : vector<2x64xf32>
    %101 = arith.addf %99, %100 : vector<2x64xf32>
    %102 = math.tanh %101 : vector<2x64xf32>
    %103 = arith.mulf %97, %102 : vector<2x64xf32>
    %c6 = arith.constant 6 : index
    %c0_23 = arith.constant 0 : index
    %104 = vector.load %arg10[%c6, %c0_23] : memref<16x128xf32, #tpu.memory_space<vmem>>, vector<2x64xf32>
    tpu.vector_store %arg10[%c6, %c0_23], %103 {strides = array<i32>} : memref<16x128xf32, #tpu.memory_space<vmem>>, vector<2x64xf32>,
    %c8 = arith.constant 8 : index
    %c64_24 = arith.constant 64 : index
    %105 = vector.load %arg10[%c8, %c64_24] : memref<16x128xf32, #tpu.memory_space<vmem>>, vector<2x64xf32>
    tpu.vector_store %arg10[%c8, %c64_24], %103 {strides = array<i32>} : memref<16x128xf32, #tpu.memory_space<vmem>>, vector<2x64xf32>,
    %106 = vector.extract_strided_slice %18 {offsets = [8, 0], sizes = [2, 256], strides = [1, 1]} : vector<16x256xf32> to vector<2x256xf32>
    %107 = arith.truncf %103 : vector<2x64xf32> to vector<2x64xbf16>
    %cst_25 = arith.constant dense<0.000000e+00> : vector<2x256xf32>
    %108 = tpu.matmul %107, %19, %cst_25 {dimension_numbers = #tpu.dot_dimension_numbers<[1], [0], [0], [1], [0, 0, 1, 1], [], []>} : vector<2x64xbf16>, vector<64x256xbf16>, vector<2x256xf32> -> vector<2x256xf32>
    %109 = arith.addf %106, %108 : vector<2x256xf32>
    %110 = arith.negf %109 : vector<2x256xf32>
    %111 = math.exp %110 : vector<2x256xf32>
    %cst_26 = arith.constant 1.000000e+00 : f32
    %112 = vector.broadcast %cst_26 : f32 to vector<2x256xf32>
    %113 = arith.addf %112, %111 : vector<2x256xf32>
    %114 = arith.divf %112, %113 : vector<2x256xf32>
    %115 = math.tanh %109 : vector<2x256xf32>
    %116 = vector.extract_strided_slice %114 {offsets = [0, 0], sizes = [2, 64], strides = [1, 1]} : vector<2x256xf32> to vector<2x64xf32>
    %117 = vector.extract_strided_slice %114 {offsets = [0, 64], sizes = [2, 64], strides = [1, 1]} : vector<2x256xf32> to vector<2x64xf32>
    %118 = vector.extract_strided_slice %114 {offsets = [0, 128], sizes = [2, 64], strides = [1, 1]} : vector<2x256xf32> to vector<2x64xf32>
    %119 = vector.extract_strided_slice %115 {offsets = [0, 192], sizes = [2, 64], strides = [1, 1]} : vector<2x256xf32> to vector<2x64xf32>
    %120 = arith.mulf %117, %101 : vector<2x64xf32>
    %121 = arith.mulf %116, %119 : vector<2x64xf32>
    %122 = arith.addf %120, %121 : vector<2x64xf32>
    %123 = math.tanh %122 : vector<2x64xf32>
    %124 = arith.mulf %118, %123 : vector<2x64xf32>
    %c8_27 = arith.constant 8 : index
    %c0_28 = arith.constant 0 : index
    %125 = vector.load %arg10[%c8_27, %c0_28] : memref<16x128xf32, #tpu.memory_space<vmem>>, vector<2x64xf32>
    tpu.vector_store %arg10[%c8_27, %c0_28], %124 {strides = array<i32>} : memref<16x128xf32, #tpu.memory_space<vmem>>, vector<2x64xf32>,
    %c6_29 = arith.constant 6 : index
    %c64_30 = arith.constant 64 : index
    %126 = vector.load %arg10[%c6_29, %c64_30] : memref<16x128xf32, #tpu.memory_space<vmem>>, vector<2x64xf32>
    tpu.vector_store %arg10[%c6_29, %c64_30], %124 {strides = array<i32>} : memref<16x128xf32, #tpu.memory_space<vmem>>, vector<2x64xf32>,
    %127 = vector.extract_strided_slice %18 {offsets = [10, 0], sizes = [2, 256], strides = [1, 1]} : vector<16x256xf32> to vector<2x256xf32>
    %128 = arith.truncf %124 : vector<2x64xf32> to vector<2x64xbf16>
    %cst_31 = arith.constant dense<0.000000e+00> : vector<2x256xf32>
    %129 = tpu.matmul %128, %19, %cst_31 {dimension_numbers = #tpu.dot_dimension_numbers<[1], [0], [0], [1], [0, 0, 1, 1], [], []>} : vector<2x64xbf16>, vector<64x256xbf16>, vector<2x256xf32> -> vector<2x256xf32>
    %130 = arith.addf %127, %129 : vector<2x256xf32>
    %131 = arith.negf %130 : vector<2x256xf32>
    %132 = math.exp %131 : vector<2x256xf32>
    %cst_32 = arith.constant 1.000000e+00 : f32
    %133 = vector.broadcast %cst_32 : f32 to vector<2x256xf32>
    %134 = arith.addf %133, %132 : vector<2x256xf32>
    %135 = arith.divf %133, %134 : vector<2x256xf32>
    %136 = math.tanh %130 : vector<2x256xf32>
    %137 = vector.extract_strided_slice %135 {offsets = [0, 0], sizes = [2, 64], strides = [1, 1]} : vector<2x256xf32> to vector<2x64xf32>
    %138 = vector.extract_strided_slice %135 {offsets = [0, 64], sizes = [2, 64], strides = [1, 1]} : vector<2x256xf32> to vector<2x64xf32>
    %139 = vector.extract_strided_slice %135 {offsets = [0, 128], sizes = [2, 64], strides = [1, 1]} : vector<2x256xf32> to vector<2x64xf32>
    %140 = vector.extract_strided_slice %136 {offsets = [0, 192], sizes = [2, 64], strides = [1, 1]} : vector<2x256xf32> to vector<2x64xf32>
    %141 = arith.mulf %138, %122 : vector<2x64xf32>
    %142 = arith.mulf %137, %140 : vector<2x64xf32>
    %143 = arith.addf %141, %142 : vector<2x64xf32>
    %144 = math.tanh %143 : vector<2x64xf32>
    %145 = arith.mulf %139, %144 : vector<2x64xf32>
    %c10_33 = arith.constant 10 : index
    %c0_34 = arith.constant 0 : index
    %146 = vector.load %arg10[%c10_33, %c0_34] : memref<16x128xf32, #tpu.memory_space<vmem>>, vector<2x64xf32>
    tpu.vector_store %arg10[%c10_33, %c0_34], %145 {strides = array<i32>} : memref<16x128xf32, #tpu.memory_space<vmem>>, vector<2x64xf32>,
    %c4_35 = arith.constant 4 : index
    %c64_36 = arith.constant 64 : index
    %147 = vector.load %arg10[%c4_35, %c64_36] : memref<16x128xf32, #tpu.memory_space<vmem>>, vector<2x64xf32>
    tpu.vector_store %arg10[%c4_35, %c64_36], %145 {strides = array<i32>} : memref<16x128xf32, #tpu.memory_space<vmem>>, vector<2x64xf32>,
    %148 = vector.extract_strided_slice %18 {offsets = [12, 0], sizes = [2, 256], strides = [1, 1]} : vector<16x256xf32> to vector<2x256xf32>
    %149 = arith.truncf %145 : vector<2x64xf32> to vector<2x64xbf16>
    %cst_37 = arith.constant dense<0.000000e+00> : vector<2x256xf32>
    %150 = tpu.matmul %149, %19, %cst_37 {dimension_numbers = #tpu.dot_dimension_numbers<[1], [0], [0], [1], [0, 0, 1, 1], [], []>} : vector<2x64xbf16>, vector<64x256xbf16>, vector<2x256xf32> -> vector<2x256xf32>
    %151 = arith.addf %148, %150 : vector<2x256xf32>
    %152 = arith.negf %151 : vector<2x256xf32>
    %153 = math.exp %152 : vector<2x256xf32>
    %cst_38 = arith.constant 1.000000e+00 : f32
    %154 = vector.broadcast %cst_38 : f32 to vector<2x256xf32>
    %155 = arith.addf %154, %153 : vector<2x256xf32>
    %156 = arith.divf %154, %155 : vector<2x256xf32>
    %157 = math.tanh %151 : vector<2x256xf32>
    %158 = vector.extract_strided_slice %156 {offsets = [0, 0], sizes = [2, 64], strides = [1, 1]} : vector<2x256xf32> to vector<2x64xf32>
    %159 = vector.extract_strided_slice %156 {offsets = [0, 64], sizes = [2, 64], strides = [1, 1]} : vector<2x256xf32> to vector<2x64xf32>
    %160 = vector.extract_strided_slice %156 {offsets = [0, 128], sizes = [2, 64], strides = [1, 1]} : vector<2x256xf32> to vector<2x64xf32>
    %161 = vector.extract_strided_slice %157 {offsets = [0, 192], sizes = [2, 64], strides = [1, 1]} : vector<2x256xf32> to vector<2x64xf32>
    %162 = arith.mulf %159, %143 : vector<2x64xf32>
    %163 = arith.mulf %158, %161 : vector<2x64xf32>
    %164 = arith.addf %162, %163 : vector<2x64xf32>
    %165 = math.tanh %164 : vector<2x64xf32>
    %166 = arith.mulf %160, %165 : vector<2x64xf32>
    %c12_39 = arith.constant 12 : index
    %c0_40 = arith.constant 0 : index
    %167 = vector.load %arg10[%c12_39, %c0_40] : memref<16x128xf32, #tpu.memory_space<vmem>>, vector<2x64xf32>
    tpu.vector_store %arg10[%c12_39, %c0_40], %166 {strides = array<i32>} : memref<16x128xf32, #tpu.memory_space<vmem>>, vector<2x64xf32>,
    %c2_41 = arith.constant 2 : index
    %c64_42 = arith.constant 64 : index
    %168 = vector.load %arg10[%c2_41, %c64_42] : memref<16x128xf32, #tpu.memory_space<vmem>>, vector<2x64xf32>
    tpu.vector_store %arg10[%c2_41, %c64_42], %166 {strides = array<i32>} : memref<16x128xf32, #tpu.memory_space<vmem>>, vector<2x64xf32>,
    %169 = vector.extract_strided_slice %18 {offsets = [14, 0], sizes = [2, 256], strides = [1, 1]} : vector<16x256xf32> to vector<2x256xf32>
    %170 = arith.truncf %166 : vector<2x64xf32> to vector<2x64xbf16>
    %cst_43 = arith.constant dense<0.000000e+00> : vector<2x256xf32>
    %171 = tpu.matmul %170, %19, %cst_43 {dimension_numbers = #tpu.dot_dimension_numbers<[1], [0], [0], [1], [0, 0, 1, 1], [], []>} : vector<2x64xbf16>, vector<64x256xbf16>, vector<2x256xf32> -> vector<2x256xf32>
    %172 = arith.addf %169, %171 : vector<2x256xf32>
    %173 = arith.negf %172 : vector<2x256xf32>
    %174 = math.exp %173 : vector<2x256xf32>
    %cst_44 = arith.constant 1.000000e+00 : f32
    %175 = vector.broadcast %cst_44 : f32 to vector<2x256xf32>
    %176 = arith.addf %175, %174 : vector<2x256xf32>
    %177 = arith.divf %175, %176 : vector<2x256xf32>
    %178 = math.tanh %172 : vector<2x256xf32>
    %179 = vector.extract_strided_slice %177 {offsets = [0, 0], sizes = [2, 64], strides = [1, 1]} : vector<2x256xf32> to vector<2x64xf32>
    %180 = vector.extract_strided_slice %177 {offsets = [0, 64], sizes = [2, 64], strides = [1, 1]} : vector<2x256xf32> to vector<2x64xf32>
    %181 = vector.extract_strided_slice %177 {offsets = [0, 128], sizes = [2, 64], strides = [1, 1]} : vector<2x256xf32> to vector<2x64xf32>
    %182 = vector.extract_strided_slice %178 {offsets = [0, 192], sizes = [2, 64], strides = [1, 1]} : vector<2x256xf32> to vector<2x64xf32>
    %183 = arith.mulf %180, %164 : vector<2x64xf32>
    %184 = arith.mulf %179, %182 : vector<2x64xf32>
    %185 = arith.addf %183, %184 : vector<2x64xf32>
    %186 = math.tanh %185 : vector<2x64xf32>
    %187 = arith.mulf %181, %186 : vector<2x64xf32>
    %c14_45 = arith.constant 14 : index
    %c0_46 = arith.constant 0 : index
    %188 = vector.load %arg10[%c14_45, %c0_46] : memref<16x128xf32, #tpu.memory_space<vmem>>, vector<2x64xf32>
    tpu.vector_store %arg10[%c14_45, %c0_46], %187 {strides = array<i32>} : memref<16x128xf32, #tpu.memory_space<vmem>>, vector<2x64xf32>,
    %c0_47 = arith.constant 0 : index
    %c64_48 = arith.constant 64 : index
    %189 = vector.load %arg10[%c0_47, %c64_48] : memref<16x128xf32, #tpu.memory_space<vmem>>, vector<2x64xf32>
    tpu.vector_store %arg10[%c0_47, %c64_48], %187 {strides = array<i32>} : memref<16x128xf32, #tpu.memory_space<vmem>>, vector<2x64xf32>,
    %c0_49 = arith.constant 0 : index
    %c0_50 = arith.constant 0 : index
    %190 = vector.load %arg10[%c0_49, %c0_50] : memref<16x128xf32, #tpu.memory_space<vmem>>, vector<16x128xf32>
    %191 = arith.truncf %190 : vector<16x128xf32> to vector<16x128xbf16>
    %c0_51 = arith.constant 0 : index
    %c0_52 = arith.constant 0 : index
    %192 = vector.load %arg4[%c0_51, %c0_52] : memref<128x256xbf16, #tpu.memory_space<vmem>>, vector<128x256xbf16>
    %cst_53 = arith.constant dense<0.000000e+00> : vector<16x256xf32>
    %193 = tpu.matmul %191, %192, %cst_53 {dimension_numbers = #tpu.dot_dimension_numbers<[1], [0], [0], [1], [0, 0, 1, 1], [], []>} : vector<16x128xbf16>, vector<128x256xbf16>, vector<16x256xf32> -> vector<16x256xf32>
    %c0_54 = arith.constant 0 : index
    %c0_55 = arith.constant 0 : index
    %194 = vector.load %arg5[%c0_54, %c0_55] : memref<1x256xf32, #tpu.memory_space<vmem>>, vector<1x256xf32>
    %195 = vector.broadcast %194 : vector<1x256xf32> to vector<16x256xf32>
    %196 = arith.addf %193, %195 : vector<16x256xf32>
    %c0_56 = arith.constant 0 : index
    %c0_57 = arith.constant 0 : index
    %197 = vector.load %arg6[%c0_56, %c0_57] : memref<64x256xbf16, #tpu.memory_space<vmem>>, vector<64x256xbf16>
    %cst_58 = arith.constant 0.000000e+00 : f32
    %198 = vector.broadcast %cst_58 : f32 to vector<2x64xf32>
    %cst_59 = arith.constant 0.000000e+00 : f32
    %199 = vector.broadcast %cst_59 : f32 to vector<2x64xf32>
    %200 = vector.extract_strided_slice %196 {offsets = [0, 0], sizes = [2, 256], strides = [1, 1]} : vector<16x256xf32> to vector<2x256xf32>
    %201 = arith.truncf %198 : vector<2x64xf32> to vector<2x64xbf16>
    %cst_60 = arith.constant dense<0.000000e+00> : vector<2x256xf32>
    %202 = tpu.matmul %201, %197, %cst_60 {dimension_numbers = #tpu.dot_dimension_numbers<[1], [0], [0], [1], [0, 0, 1, 1], [], []>} : vector<2x64xbf16>, vector<64x256xbf16>, vector<2x256xf32> -> vector<2x256xf32>
    %203 = arith.addf %200, %202 : vector<2x256xf32>
    %204 = arith.negf %203 : vector<2x256xf32>
    %205 = math.exp %204 : vector<2x256xf32>
    %cst_61 = arith.constant 1.000000e+00 : f32
    %206 = vector.broadcast %cst_61 : f32 to vector<2x256xf32>
    %207 = arith.addf %206, %205 : vector<2x256xf32>
    %208 = arith.divf %206, %207 : vector<2x256xf32>
    %209 = math.tanh %203 : vector<2x256xf32>
    %210 = vector.extract_strided_slice %208 {offsets = [0, 0], sizes = [2, 64], strides = [1, 1]} : vector<2x256xf32> to vector<2x64xf32>
    %211 = vector.extract_strided_slice %208 {offsets = [0, 64], sizes = [2, 64], strides = [1, 1]} : vector<2x256xf32> to vector<2x64xf32>
    %212 = vector.extract_strided_slice %208 {offsets = [0, 128], sizes = [2, 64], strides = [1, 1]} : vector<2x256xf32> to vector<2x64xf32>
    %213 = vector.extract_strided_slice %209 {offsets = [0, 192], sizes = [2, 64], strides = [1, 1]} : vector<2x256xf32> to vector<2x64xf32>
    %214 = arith.mulf %211, %199 : vector<2x64xf32>
    %215 = arith.mulf %210, %213 : vector<2x64xf32>
    %216 = arith.addf %214, %215 : vector<2x64xf32>
    %217 = math.tanh %216 : vector<2x64xf32>
    %218 = arith.mulf %212, %217 : vector<2x64xf32>
    %219 = vector.extract_strided_slice %218 {offsets = [0, 32], sizes = [2, 32], strides = [1, 1]} : vector<2x64xf32> to vector<2x32xf32>
    %220 = vector.extract_strided_slice %196 {offsets = [2, 0], sizes = [2, 256], strides = [1, 1]} : vector<16x256xf32> to vector<2x256xf32>
    %221 = arith.truncf %218 : vector<2x64xf32> to vector<2x64xbf16>
    %cst_62 = arith.constant dense<0.000000e+00> : vector<2x256xf32>
    %222 = tpu.matmul %221, %197, %cst_62 {dimension_numbers = #tpu.dot_dimension_numbers<[1], [0], [0], [1], [0, 0, 1, 1], [], []>} : vector<2x64xbf16>, vector<64x256xbf16>, vector<2x256xf32> -> vector<2x256xf32>
    %223 = arith.addf %220, %222 : vector<2x256xf32>
    %224 = arith.negf %223 : vector<2x256xf32>
    %225 = math.exp %224 : vector<2x256xf32>
    %cst_63 = arith.constant 1.000000e+00 : f32
    %226 = vector.broadcast %cst_63 : f32 to vector<2x256xf32>
    %227 = arith.addf %226, %225 : vector<2x256xf32>
    %228 = arith.divf %226, %227 : vector<2x256xf32>
    %229 = math.tanh %223 : vector<2x256xf32>
    %230 = vector.extract_strided_slice %228 {offsets = [0, 0], sizes = [2, 64], strides = [1, 1]} : vector<2x256xf32> to vector<2x64xf32>
    %231 = vector.extract_strided_slice %228 {offsets = [0, 64], sizes = [2, 64], strides = [1, 1]} : vector<2x256xf32> to vector<2x64xf32>
    %232 = vector.extract_strided_slice %228 {offsets = [0, 128], sizes = [2, 64], strides = [1, 1]} : vector<2x256xf32> to vector<2x64xf32>
    %233 = vector.extract_strided_slice %229 {offsets = [0, 192], sizes = [2, 64], strides = [1, 1]} : vector<2x256xf32> to vector<2x64xf32>
    %234 = arith.mulf %231, %216 : vector<2x64xf32>
    %235 = arith.mulf %230, %233 : vector<2x64xf32>
    %236 = arith.addf %234, %235 : vector<2x64xf32>
    %237 = math.tanh %236 : vector<2x64xf32>
    %238 = arith.mulf %232, %237 : vector<2x64xf32>
    %239 = vector.extract_strided_slice %196 {offsets = [4, 0], sizes = [2, 256], strides = [1, 1]} : vector<16x256xf32> to vector<2x256xf32>
    %240 = arith.truncf %238 : vector<2x64xf32> to vector<2x64xbf16>
    %cst_64 = arith.constant dense<0.000000e+00> : vector<2x256xf32>
    %241 = tpu.matmul %240, %197, %cst_64 {dimension_numbers = #tpu.dot_dimension_numbers<[1], [0], [0], [1], [0, 0, 1, 1], [], []>} : vector<2x64xbf16>, vector<64x256xbf16>, vector<2x256xf32> -> vector<2x256xf32>
    %242 = arith.addf %239, %241 : vector<2x256xf32>
    %243 = arith.negf %242 : vector<2x256xf32>
    %244 = math.exp %243 : vector<2x256xf32>
    %cst_65 = arith.constant 1.000000e+00 : f32
    %245 = vector.broadcast %cst_65 : f32 to vector<2x256xf32>
    %246 = arith.addf %245, %244 : vector<2x256xf32>
    %247 = arith.divf %245, %246 : vector<2x256xf32>
    %248 = math.tanh %242 : vector<2x256xf32>
    %249 = vector.extract_strided_slice %247 {offsets = [0, 0], sizes = [2, 64], strides = [1, 1]} : vector<2x256xf32> to vector<2x64xf32>
    %250 = vector.extract_strided_slice %247 {offsets = [0, 64], sizes = [2, 64], strides = [1, 1]} : vector<2x256xf32> to vector<2x64xf32>
    %251 = vector.extract_strided_slice %247 {offsets = [0, 128], sizes = [2, 64], strides = [1, 1]} : vector<2x256xf32> to vector<2x64xf32>
    %252 = vector.extract_strided_slice %248 {offsets = [0, 192], sizes = [2, 64], strides = [1, 1]} : vector<2x256xf32> to vector<2x64xf32>
    %253 = arith.mulf %250, %236 : vector<2x64xf32>
    %254 = arith.mulf %249, %252 : vector<2x64xf32>
    %255 = arith.addf %253, %254 : vector<2x64xf32>
    %256 = math.tanh %255 : vector<2x64xf32>
    %257 = arith.mulf %251, %256 : vector<2x64xf32>
    %258 = vector.extract_strided_slice %196 {offsets = [6, 0], sizes = [2, 256], strides = [1, 1]} : vector<16x256xf32> to vector<2x256xf32>
    %259 = arith.truncf %257 : vector<2x64xf32> to vector<2x64xbf16>
    %cst_66 = arith.constant dense<0.000000e+00> : vector<2x256xf32>
    %260 = tpu.matmul %259, %197, %cst_66 {dimension_numbers = #tpu.dot_dimension_numbers<[1], [0], [0], [1], [0, 0, 1, 1], [], []>} : vector<2x64xbf16>, vector<64x256xbf16>, vector<2x256xf32> -> vector<2x256xf32>
    %261 = arith.addf %258, %260 : vector<2x256xf32>
    %262 = arith.negf %261 : vector<2x256xf32>
    %263 = math.exp %262 : vector<2x256xf32>
    %cst_67 = arith.constant 1.000000e+00 : f32
    %264 = vector.broadcast %cst_67 : f32 to vector<2x256xf32>
    %265 = arith.addf %264, %263 : vector<2x256xf32>
    %266 = arith.divf %264, %265 : vector<2x256xf32>
    %267 = math.tanh %261 : vector<2x256xf32>
    %268 = vector.extract_strided_slice %266 {offsets = [0, 0], sizes = [2, 64], strides = [1, 1]} : vector<2x256xf32> to vector<2x64xf32>
    %269 = vector.extract_strided_slice %266 {offsets = [0, 64], sizes = [2, 64], strides = [1, 1]} : vector<2x256xf32> to vector<2x64xf32>
    %270 = vector.extract_strided_slice %266 {offsets = [0, 128], sizes = [2, 64], strides = [1, 1]} : vector<2x256xf32> to vector<2x64xf32>
    %271 = vector.extract_strided_slice %267 {offsets = [0, 192], sizes = [2, 64], strides = [1, 1]} : vector<2x256xf32> to vector<2x64xf32>
    %272 = arith.mulf %269, %255 : vector<2x64xf32>
    %273 = arith.mulf %268, %271 : vector<2x64xf32>
    %274 = arith.addf %272, %273 : vector<2x64xf32>
    %275 = math.tanh %274 : vector<2x64xf32>
    %276 = arith.mulf %270, %275 : vector<2x64xf32>
    %277 = vector.extract_strided_slice %196 {offsets = [8, 0], sizes = [2, 256], strides = [1, 1]} : vector<16x256xf32> to vector<2x256xf32>
    %278 = arith.truncf %276 : vector<2x64xf32> to vector<2x64xbf16>
    %cst_68 = arith.constant dense<0.000000e+00> : vector<2x256xf32>
    %279 = tpu.matmul %278, %197, %cst_68 {dimension_numbers = #tpu.dot_dimension_numbers<[1], [0], [0], [1], [0, 0, 1, 1], [], []>} : vector<2x64xbf16>, vector<64x256xbf16>, vector<2x256xf32> -> vector<2x256xf32>
    %280 = arith.addf %277, %279 : vector<2x256xf32>
    %281 = arith.negf %280 : vector<2x256xf32>
    %282 = math.exp %281 : vector<2x256xf32>
    %cst_69 = arith.constant 1.000000e+00 : f32
    %283 = vector.broadcast %cst_69 : f32 to vector<2x256xf32>
    %284 = arith.addf %283, %282 : vector<2x256xf32>
    %285 = arith.divf %283, %284 : vector<2x256xf32>
    %286 = math.tanh %280 : vector<2x256xf32>
    %287 = vector.extract_strided_slice %285 {offsets = [0, 0], sizes = [2, 64], strides = [1, 1]} : vector<2x256xf32> to vector<2x64xf32>
    %288 = vector.extract_strided_slice %285 {offsets = [0, 64], sizes = [2, 64], strides = [1, 1]} : vector<2x256xf32> to vector<2x64xf32>
    %289 = vector.extract_strided_slice %285 {offsets = [0, 128], sizes = [2, 64], strides = [1, 1]} : vector<2x256xf32> to vector<2x64xf32>
    %290 = vector.extract_strided_slice %286 {offsets = [0, 192], sizes = [2, 64], strides = [1, 1]} : vector<2x256xf32> to vector<2x64xf32>
    %291 = arith.mulf %288, %274 : vector<2x64xf32>
    %292 = arith.mulf %287, %290 : vector<2x64xf32>
    %293 = arith.addf %291, %292 : vector<2x64xf32>
    %294 = math.tanh %293 : vector<2x64xf32>
    %295 = arith.mulf %289, %294 : vector<2x64xf32>
    %296 = vector.extract_strided_slice %196 {offsets = [10, 0], sizes = [2, 256], strides = [1, 1]} : vector<16x256xf32> to vector<2x256xf32>
    %297 = arith.truncf %295 : vector<2x64xf32> to vector<2x64xbf16>
    %cst_70 = arith.constant dense<0.000000e+00> : vector<2x256xf32>
    %298 = tpu.matmul %297, %197, %cst_70 {dimension_numbers = #tpu.dot_dimension_numbers<[1], [0], [0], [1], [0, 0, 1, 1], [], []>} : vector<2x64xbf16>, vector<64x256xbf16>, vector<2x256xf32> -> vector<2x256xf32>
    %299 = arith.addf %296, %298 : vector<2x256xf32>
    %300 = arith.negf %299 : vector<2x256xf32>
    %301 = math.exp %300 : vector<2x256xf32>
    %cst_71 = arith.constant 1.000000e+00 : f32
    %302 = vector.broadcast %cst_71 : f32 to vector<2x256xf32>
    %303 = arith.addf %302, %301 : vector<2x256xf32>
    %304 = arith.divf %302, %303 : vector<2x256xf32>
    %305 = math.tanh %299 : vector<2x256xf32>
    %306 = vector.extract_strided_slice %304 {offsets = [0, 0], sizes = [2, 64], strides = [1, 1]} : vector<2x256xf32> to vector<2x64xf32>
    %307 = vector.extract_strided_slice %304 {offsets = [0, 64], sizes = [2, 64], strides = [1, 1]} : vector<2x256xf32> to vector<2x64xf32>
    %308 = vector.extract_strided_slice %304 {offsets = [0, 128], sizes = [2, 64], strides = [1, 1]} : vector<2x256xf32> to vector<2x64xf32>
    %309 = vector.extract_strided_slice %305 {offsets = [0, 192], sizes = [2, 64], strides = [1, 1]} : vector<2x256xf32> to vector<2x64xf32>
    %310 = arith.mulf %307, %293 : vector<2x64xf32>
    %311 = arith.mulf %306, %309 : vector<2x64xf32>
    %312 = arith.addf %310, %311 : vector<2x64xf32>
    %313 = math.tanh %312 : vector<2x64xf32>
    %314 = arith.mulf %308, %313 : vector<2x64xf32>
    %315 = vector.extract_strided_slice %196 {offsets = [12, 0], sizes = [2, 256], strides = [1, 1]} : vector<16x256xf32> to vector<2x256xf32>
    %316 = arith.truncf %314 : vector<2x64xf32> to vector<2x64xbf16>
    %cst_72 = arith.constant dense<0.000000e+00> : vector<2x256xf32>
    %317 = tpu.matmul %316, %197, %cst_72 {dimension_numbers = #tpu.dot_dimension_numbers<[1], [0], [0], [1], [0, 0, 1, 1], [], []>} : vector<2x64xbf16>, vector<64x256xbf16>, vector<2x256xf32> -> vector<2x256xf32>
    %318 = arith.addf %315, %317 : vector<2x256xf32>
    %319 = arith.negf %318 : vector<2x256xf32>
    %320 = math.exp %319 : vector<2x256xf32>
    %cst_73 = arith.constant 1.000000e+00 : f32
    %321 = vector.broadcast %cst_73 : f32 to vector<2x256xf32>
    %322 = arith.addf %321, %320 : vector<2x256xf32>
    %323 = arith.divf %321, %322 : vector<2x256xf32>
    %324 = math.tanh %318 : vector<2x256xf32>
    %325 = vector.extract_strided_slice %323 {offsets = [0, 0], sizes = [2, 64], strides = [1, 1]} : vector<2x256xf32> to vector<2x64xf32>
    %326 = vector.extract_strided_slice %323 {offsets = [0, 64], sizes = [2, 64], strides = [1, 1]} : vector<2x256xf32> to vector<2x64xf32>
    %327 = vector.extract_strided_slice %323 {offsets = [0, 128], sizes = [2, 64], strides = [1, 1]} : vector<2x256xf32> to vector<2x64xf32>
    %328 = vector.extract_strided_slice %324 {offsets = [0, 192], sizes = [2, 64], strides = [1, 1]} : vector<2x256xf32> to vector<2x64xf32>
    %329 = arith.mulf %326, %312 : vector<2x64xf32>
    %330 = arith.mulf %325, %328 : vector<2x64xf32>
    %331 = arith.addf %329, %330 : vector<2x64xf32>
    %332 = math.tanh %331 : vector<2x64xf32>
    %333 = arith.mulf %327, %332 : vector<2x64xf32>
    %334 = vector.extract_strided_slice %196 {offsets = [14, 0], sizes = [2, 256], strides = [1, 1]} : vector<16x256xf32> to vector<2x256xf32>
    %335 = arith.truncf %333 : vector<2x64xf32> to vector<2x64xbf16>
    %cst_74 = arith.constant dense<0.000000e+00> : vector<2x256xf32>
    %336 = tpu.matmul %335, %197, %cst_74 {dimension_numbers = #tpu.dot_dimension_numbers<[1], [0], [0], [1], [0, 0, 1, 1], [], []>} : vector<2x64xbf16>, vector<64x256xbf16>, vector<2x256xf32> -> vector<2x256xf32>
    %337 = arith.addf %334, %336 : vector<2x256xf32>
    %338 = arith.negf %337 : vector<2x256xf32>
    %339 = math.exp %338 : vector<2x256xf32>
    %cst_75 = arith.constant 1.000000e+00 : f32
    %340 = vector.broadcast %cst_75 : f32 to vector<2x256xf32>
    %341 = arith.addf %340, %339 : vector<2x256xf32>
    %342 = arith.divf %340, %341 : vector<2x256xf32>
    %343 = math.tanh %337 : vector<2x256xf32>
    %344 = vector.extract_strided_slice %342 {offsets = [0, 0], sizes = [2, 64], strides = [1, 1]} : vector<2x256xf32> to vector<2x64xf32>
    %345 = vector.extract_strided_slice %342 {offsets = [0, 64], sizes = [2, 64], strides = [1, 1]} : vector<2x256xf32> to vector<2x64xf32>
    %346 = vector.extract_strided_slice %342 {offsets = [0, 128], sizes = [2, 64], strides = [1, 1]} : vector<2x256xf32> to vector<2x64xf32>
    %347 = vector.extract_strided_slice %343 {offsets = [0, 192], sizes = [2, 64], strides = [1, 1]} : vector<2x256xf32> to vector<2x64xf32>
    %348 = arith.mulf %345, %331 : vector<2x64xf32>
    %349 = arith.mulf %344, %347 : vector<2x64xf32>
    %350 = arith.addf %348, %349 : vector<2x64xf32>
    %351 = math.tanh %350 : vector<2x64xf32>
    %352 = arith.mulf %346, %351 : vector<2x64xf32>
    %353 = vector.extract_strided_slice %352 {offsets = [0, 0], sizes = [2, 32], strides = [1, 1]} : vector<2x64xf32> to vector<2x32xf32>
    %354 = tpu.concatenate %353, %219 in 1 : vector<2x32xf32>, vector<2x32xf32> -> vector<2x64xf32>
    %355 = arith.truncf %354 : vector<2x64xf32> to vector<2x64xbf16>
    %c0_76 = arith.constant 0 : index
    %c0_77 = arith.constant 0 : index
    %356 = vector.load %arg7[%c0_76, %c0_77] : memref<64x4xbf16, #tpu.memory_space<vmem>>, vector<64x4xbf16>
    %cst_78 = arith.constant dense<0.000000e+00> : vector<2x4xf32>
    %357 = tpu.matmul %355, %356, %cst_78 {dimension_numbers = #tpu.dot_dimension_numbers<[1], [0], [0], [1], [0, 0, 1, 1], [], []>} : vector<2x64xbf16>, vector<64x4xbf16>, vector<2x4xf32> -> vector<2x4xf32>
    %c0_79 = arith.constant 0 : index
    %c0_80 = arith.constant 0 : index
    %358 = vector.load %arg8[%c0_79, %c0_80] : memref<1x4xf32, #tpu.memory_space<vmem>>, vector<1x4xf32>
    %359 = vector.broadcast %358 : vector<1x4xf32> to vector<2x4xf32>
    %360 = arith.addf %357, %359 : vector<2x4xf32>
    %361 = arith.negf %360 : vector<2x4xf32>
    %362 = math.exp %361 : vector<2x4xf32>
    %cst_81 = arith.constant 1.000000e+00 : f32
    %363 = vector.broadcast %cst_81 : f32 to vector<2x4xf32>
    %364 = arith.addf %363, %362 : vector<2x4xf32>
    %365 = arith.divf %363, %364 : vector<2x4xf32>
    %c0_82 = arith.constant 0 : index
    %c0_83 = arith.constant 0 : index
    %366 = vector.load %arg9[%c0_82, %c0_83] : memref<2x4xf32, #tpu.memory_space<vmem>>, vector<2x4xf32>
    tpu.vector_store %arg9[%c0_82, %c0_83], %365 {strides = array<i32>} : memref<2x4xf32, #tpu.memory_space<vmem>>, vector<2x4xf32>,
    return
  }
}

</mosaic_0001>

<llo_original>
// kernel: model_forward.1
$region0: #{model_forward.1}
  #allocation0 [shape = 'u32[]', space=smem, size = 0x4, offset = 0x4, fixed_abs, tag = 'smem constant byte address 0x4 - core index']
  #allocation1 [shape = 'u32[144,128]{1,0:T(1,128)}', space=vmem, size = 0x12000, scoped, tag = 'internal scratch']
  #allocation2 [shape = 'f32[16,128]{1,0:T(8,128)}', space=vmem, size = 0x2000, scoped, tag = 'scratch operand']
  %s0 = inlined_call_operand.vmem [shape: s32[16,2], index: 0, kind: input, shape index: {}]
  %s1 = inlined_call_operand.vmem [shape: bf16[100,256], index: 1, kind: input, shape index: {}]
  %s2 = inlined_call_operand.vmem [shape: f32[1,256], index: 2, kind: input, shape index: {}]
  %s3 = inlined_call_operand.hbm [shape: bf16[64,256], index: 3, kind: input, shape index: {}]
  %s4 = inlined_call_operand.hbm [shape: bf16[128,256], index: 4, kind: input, shape index: {}]
  %s5 = inlined_call_operand.vmem [shape: f32[1,256], index: 5, kind: input, shape index: {}]
  %s6 = inlined_call_operand.hbm [shape: bf16[64,256], index: 6, kind: input, shape index: {}]
  %s7 = inlined_call_operand.vmem [shape: bf16[64,4], index: 7, kind: input, shape index: {}]
  %s8 = inlined_call_operand.hbm [shape: f32[1,4], index: 8, kind: input, shape index: {}]
  %s9 = inlined_call_operand.hbm [shape: f32[2,4], index: 9, kind: output, shape index: {}]
  %s10 = sld [smem:[#allocation0]]
  $region62: #{model_forward.1} parent=0
    _
  %s12 = ssub.s32 1, %s10
  %s13 = scalar_select 0, %s12, %s10
  $region1: #{model_forward.1} parent=0
    #allocation3 [shape = 'u8[32768]{0}', space=vmem, size = 0x8000, scoped, tag = 'input window, operand 3, single buffered']
    #allocation4 [shape = 's32[1]{0}', space=sflag, size = 0x4, scoped, tag = 'scoped memory for model_forward.1']
    #allocation5 [shape = 's32[1]{0}', space=sflag, size = 0x4, scoped, tag = 'scoped memory for model_forward.1']
    #allocation6 [shape = 'u8[65536]{0}', space=vmem, size = 0x10000, scoped, tag = 'input window, operand 4, single buffered']
    #allocation7 [shape = 's32[1]{0}', space=sflag, size = 0x4, scoped, tag = 'scoped memory for model_forward.1']
    #allocation8 [shape = 'u8[32768]{0}', space=vmem, size = 0x8000, scoped, tag = 'input window, operand 6, single buffered']
    #allocation9 [shape = 'u8[512]{0}', space=vmem, size = 0x400, scoped, tag = 'input window, operand 8, single buffered']
    #allocation10 [shape = 's32[1]{0}', space=sflag, size = 0x4, scoped, tag = 'scoped memory for model_forward.1']
    #allocation11 [shape = 'u8[1024]{0}', space=vmem, size = 0x400, scoped, tag = 'output window, operand 0, single buffered']
    %14 = vsyncpa [#allocation4], 0
    %15 = vsyncpa [#allocation7], 0
    %16 = vsyncpa [#allocation10], 0
    %17 = vsyncpa [#allocation5], 0
    // Predicated region
    $region2: #{model_forward.1} parent=1 // pred_check
      _
    $region3: #{model_forward.1} parent=1 // pred_check_branch
      %19 = sbr.rel (0) target = $region5
    $region4: #{model_forward.1} parent=1 // pred_region
      _
    $region5: #{model_forward.1} parent=1 // pred_fallthru
      _
    // Predicated region
    $region6: #{model_forward.1} parent=1 // pred_check
      _
    $region7: #{model_forward.1} parent=1 // pred_check_branch
      %21 = sbr.rel (0) target = $region9
    $region8: #{model_forward.1} parent=1 // pred_region
      _
    $region9: #{model_forward.1} parent=1 // pred_fallthru
      _
    // Predicated region
    $region10: #{model_forward.1} parent=1 // pred_check
      _
    $region11: #{model_forward.1} parent=1 // pred_check_branch
      %23 = sbr.rel (0) target = $region13
    $region12: #{model_forward.1} parent=1 // pred_region
      _
    $region13: #{model_forward.1} parent=1 // pred_fallthru
      _
    // Predicated region
    $region14: #{model_forward.1} parent=1 // pred_check
      _
    $region15: #{model_forward.1} parent=1 // pred_check_branch
      %25 = sbr.rel (0) target = $region17
    $region16: #{model_forward.1} parent=1 // pred_region
      %s27 = ssub.s32 1024, 1024
      %28 = vsyncadd [#allocation4], %s27
      %s29 = sshll.u32 [#allocation3], 4
      %s30 = int_to_ptr.vmem [resolvable:$true] %s29
      %35 = dma.hbm_to_vmem [thread:$0]  %s3, 1024, %s30, [#allocation4], 128, 128, 8
    $region17: #{model_forward.1} parent=1 // pred_fallthru
      _
    // Predicated region
    $region18: #{model_forward.1} parent=1 // pred_check
      _
    $region19: #{model_forward.1} parent=1 // pred_check_branch
      %37 = sbr.rel (0) target = $region21
    $region20: #{model_forward.1} parent=1 // pred_region
      %s39 = ssub.s32 2048, 2048
      %40 = vsyncadd [#allocation7], %s39
      %s41 = sshll.u32 [#allocation6], 4
      %s42 = int_to_ptr.vmem [resolvable:$true] %s41
      %47 = dma.hbm_to_vmem [thread:$0]  %s4, 2048, %s42, [#allocation7], 128, 128, 8
    $region21: #{model_forward.1} parent=1 // pred_fallthru
      _
    // Predicated region
    $region22: #{model_forward.1} parent=1 // pred_check
      _
    $region23: #{model_forward.1} parent=1 // pred_check_branch
      %49 = sbr.rel (0) target = $region25
    $region24: #{model_forward.1} parent=1 // pred_region
      _
    $region25: #{model_forward.1} parent=1 // pred_fallthru
      _
    // Predicated region
    $region26: #{model_forward.1} parent=1 // pred_check
      _
    $region27: #{model_forward.1} parent=1 // pred_check_branch
      %51 = sbr.rel (0) target = $region29
    $region28: #{model_forward.1} parent=1 // pred_region
      %s53 = ssub.s32 1024, 1024
      %54 = vsyncadd [#allocation7], %s53
      %s55 = sshll.u32 [#allocation8], 4
      %s56 = int_to_ptr.vmem [resolvable:$true] %s55
      %61 = dma.hbm_to_vmem [thread:$0]  %s6, 1024, %s56, [#allocation7], 128, 128, 8
    $region29: #{model_forward.1} parent=1 // pred_fallthru
      _
    // Predicated region
    $region30: #{model_forward.1} parent=1 // pred_check
      _
    $region31: #{model_forward.1} parent=1 // pred_check_branch
      %63 = sbr.rel (0) target = $region33
    $region32: #{model_forward.1} parent=1 // pred_region
      _
    $region33: #{model_forward.1} parent=1 // pred_fallthru
      _
    // Predicated region
    $region34: #{model_forward.1} parent=1 // pred_check
      _
    $region35: #{model_forward.1} parent=1 // pred_check_branch
      %65 = sbr.rel (0) target = $region37
    $region36: #{model_forward.1} parent=1 // pred_region
      %s67 = ssub.s32 16, 16
      %68 = vsyncadd [#allocation10], %s67
      %s70 = sshll.u32 [#allocation9], 4
      %s71 = int_to_ptr.vmem [resolvable:$true] %s70
      %73 = dma.hbm_to_vmem [thread:$0]  %s8, 16, %s71, [#allocation10]
    $region37: #{model_forward.1} parent=1 // pred_fallthru
      _
    // Predicated region
    $region38: #{model_forward.1} parent=1 // pred_check
      _
    $region39: #{model_forward.1} parent=1 // pred_check_branch
      %75 = sbr.rel (0) target = $region41
    $region40: #{model_forward.1} parent=1 // pred_region
      %76 = dma.done [#allocation4], 1024
    $region41: #{model_forward.1} parent=1 // pred_fallthru
      _
    // Predicated region
    $region42: #{model_forward.1} parent=1 // pred_check
      _
    $region43: #{model_forward.1} parent=1 // pred_check_branch
      %78 = sbr.rel (0) target = $region45
    $region44: #{model_forward.1} parent=1 // pred_region
      %79 = dma.done [#allocation7], 2048
    $region45: #{model_forward.1} parent=1 // pred_fallthru
      _
    // Predicated region
    $region46: #{model_forward.1} parent=1 // pred_check
      _
    $region47: #{model_forward.1} parent=1 // pred_check_branch
      %81 = sbr.rel (0) target = $region49
    $region48: #{model_forward.1} parent=1 // pred_region
      %82 = dma.done [#allocation7], 1024
    $region49: #{model_forward.1} parent=1 // pred_fallthru
      _
    // Predicated region
    $region50: #{model_forward.1} parent=1 // pred_check
      _
    $region51: #{model_forward.1} parent=1 // pred_check_branch
      %84 = sbr.rel (0) target = $region53
    $region52: #{model_forward.1} parent=1 // pred_region
      %85 = dma.done [#allocation10], 16
    $region53: #{model_forward.1} parent=1 // pred_fallthru
      _
    %v87 = vld [vmem:[%s0] sm:$0xff]
    %v88 = vld [vmem:[%s0 + $0x8] sm:$0xff]
    %v89 = vlaneseq
    %v90 = vand.u32 %v89, 127
    %91 = vset.pattern.permute.xlu0 0
    %92 = vperm.xlu0 %91, %v87
    %v93 = vpop.permute.xlu0 %92
    %94 = vset.pattern.permute.xlu0 0
    %95 = vperm.xlu0 %94, %v88
    %v96 = vpop.permute.xlu0 %95
    %vm97 = vcmp.eq.s32.totalorder %v90, %v93
    %vm98 = vcmp.eq.s32.totalorder %v90, %v96
    %v99 = vadd.s32 %v87, 50
    %v100 = vadd.s32 %v88, 50
    %101 = vset.pattern.permute.xlu0 1
    %102 = vperm.xlu0 %101, %v99
    %v103 = vpop.permute.xlu0 %102
    %104 = vset.pattern.permute.xlu0 1
    %105 = vperm.xlu0 %104, %v100
    %v106 = vpop.permute.xlu0 %105
    %vm107 = vcmp.eq.s32.totalorder %v90, %v103
    %vm108 = vcmp.eq.s32.totalorder %v90, %v106
    %vm109 = vmor %vm97, %vm107
    %vm110 = vmor %vm98, %vm108
    %v111 = vsel %vm109, 1, 0
    %v112 = vsel %vm110, 1, 0
    %v113 = vcvt.s32.f32 %v111
    %v114 = vcvt.s32.f32 %v112
    %v115 = vpack.c.bf16 %v114, %v113
    %v116 = vld [vmem:[%s1] sm:$0xff]
    %v117 = vld [vmem:[%s1 + $0x8] sm:$0xff]
    %v118 = vld [vmem:[%s1 + $0x10] sm:$0xff]
    %v119 = vld [vmem:[%s1 + $0x18] sm:$0xff]
    %v120 = vld [vmem:[%s1 + $0x20] sm:$0xff]
    %v121 = vld [vmem:[%s1 + $0x28] sm:$0xff]
    %v122 = vld [vmem:[%s1 + $0x30] sm:$0xff]
    %v123 = vld [vmem:[%s1 + $0x38] sm:$0xff]
    %v124 = vld [vmem:[%s1 + $0x40] sm:$0xff]
    %v125 = vld [vmem:[%s1 + $0x48] sm:$0xff]
    %v126 = vld [vmem:[%s1 + $0x50] sm:$0xff]
    %v127 = vld [vmem:[%s1 + $0x58] sm:$0xff]
    %v128 = vld [vmem:[%s1 + $0x60] sm:$0x33]
    %v129 = vld [vmem:[%s2] sm:$0x3]
    %v131 = vlaneseq
    %v132 = vshrl.u32 %v131, 7
    %v133 = vsub.s32 0, %v132
    %v134 = vrot.slane %v129, %v133
    %v135 = vlaneseq
    %v136 = vshrl.u32 %v135, 7
    %v137 = vsub.s32 1, %v136
    %v138 = vrot.slane %v129, %v137
    %v154 = vunpack.c.l.b16 %v116
    %v155 = vunpack.c.h.b16 %v116
    %v156 = vunpack.c.l.b16 %v117
    %v157 = vunpack.c.h.b16 %v117
    %v158 = vunpack.c.l.b16 %v118
    %v159 = vunpack.c.h.b16 %v118
    %v160 = vunpack.c.l.b16 %v119
    %v161 = vunpack.c.h.b16 %v119
    %v162 = vunpack.c.l.b16 %v120
    %v163 = vunpack.c.h.b16 %v120
    %v164 = vunpack.c.l.b16 %v121
    %v165 = vunpack.c.h.b16 %v121
    %v166 = vunpack.c.l.b16 %v122
    %v167 = vunpack.c.h.b16 %v122
    %v168 = vunpack.c.l.b16 %v123
    %v169 = vunpack.c.h.b16 %v123
    %v170 = vunpack.c.l.b16 %v124
    %v171 = vunpack.c.h.b16 %v124
    %v172 = vunpack.c.l.b16 %v125
    %v173 = vunpack.c.h.b16 %v125
    %v174 = vunpack.c.l.b16 %v126
    %v175 = vunpack.c.h.b16 %v126
    %v176 = vunpack.c.l.b16 %v127
    %v177 = vunpack.c.h.b16 %v127
    %v178 = vunpack.c.l.b16 %v128
    %v179 = vunpack.c.h.b16 %v128
    %v180 = vpack.c.b16 %v156, %v154
    %v181 = vpack.c.b16 %v157, %v155
    %v182 = vpack.c.b16 %v160, %v158
    %v183 = vpack.c.b16 %v161, %v159
    %v184 = vpack.c.b16 %v164, %v162
    %v185 = vpack.c.b16 %v165, %v163
    %v186 = vpack.c.b16 %v168, %v166
    %v187 = vpack.c.b16 %v169, %v167
    %v188 = vpack.c.b16 %v172, %v170
    %v189 = vpack.c.b16 %v173, %v171
    %v190 = vpack.c.b16 %v176, %v174
    %v191 = vpack.c.b16 %v177, %v175
    %v192 = vpack.c.b16 %v178, %v178
    %v193 = vpack.c.b16 %v179, %v179
    %vm206 = vcmask 818176
    %v208 = vsel %vm206, %v115, 0
    %vm210 = vcmask 1041408
    %v212 = vsel %vm210, %v192, 0
    %v215 = vsel %vm210, %v193, 0
    %217 = vmatprep.subr.bf16.mxu0 0
    %218 = vmatpush1.bf16.msra.mxu0 0
    %219 = vmatprep.subr.bf16.mxu0 %v215
    %220 = vmatpush1.bf16.msra.mxu0 %v212
    %221 = vmatprep.subr.bf16.mxu0 %v191
    %222 = vmatpush1.bf16.msra.mxu0 %v190
    %223 = vmatprep.subr.bf16.mxu0 %v189
    %224 = vmatpush1.bf16.msra.mxu0 %v188
    %225 = vmatprep.subr.bf16.mxu0 %v187
    %226 = vmatpush1.bf16.msra.mxu0 %v186
    %227 = vmatprep.subr.bf16.mxu0 %v185
    %228 = vmatpush1.bf16.msra.mxu0 %v184
    %229 = vmatprep.subr.bf16.mxu0 %v183
    %230 = vmatpush1.bf16.msra.mxu0 %v182
    %231 = vmatprep.subr.bf16.mxu0 %v181
    %232 = vmatpush1.bf16.msra.mxu0 %v180
    %233 = vmatprep.subr.bf16.mxu0 0
    %234 = vmatpush2.bf16.msra.mxu0 0
    %235 = vmatprep.subr.bf16.mxu0 0
    %236 = vmatpush2.bf16.msra.mxu0 0
    %237 = vmatprep.subr.bf16.mxu0 0
    %238 = vmatpush2.bf16.msra.mxu0 0
    %239 = vmatprep.subr.bf16.mxu0 0
    %240 = vmatpush2.bf16.msra.mxu0 0
    %241 = vmatprep.subr.bf16.mxu0 0
    %242 = vmatpush2.bf16.msra.mxu0 0
    %243 = vmatprep.subr.bf16.mxu0 0
    %244 = vmatpush2.bf16.msra.mxu0 0
    %245 = vmatprep.subr.bf16.mxu0 0
    %246 = vmatpush2.bf16.msra.mxu0 0
    %247 = vmatprep.subr.bf16.mxu0 0
    %248 = vmatpush2.bf16.msra.mxu0 0
    %249 = vmatprep.mubr.bf16.mxu0 0
    %250 = vmatmul.mubr.bf16.gmra.mxu0 %v208
    %v251 = vpop.f32.mrf.mxu0
    %v252 = vadd.f32 %v134, %v251
    %v253 = vpop.f32.mrf.mxu0
    %v254 = vadd.f32 %v138, %v253
    %v255 = vpop.f32.mrf.mxu0
    %v256 = vadd.f32 %v134, %v255
    %v257 = vpop.f32.mrf.mxu0
    %v258 = vadd.f32 %v138, %v257
    %259 = vdwg.mxu0
    %v260 = vld [vmem:[#allocation3] sm:$0xff]
    %v261 = vld [vmem:[#allocation3 + $0x8] sm:$0xff]
    %v262 = vld [vmem:[#allocation3 + $0x10] sm:$0xff]
    %v263 = vld [vmem:[#allocation3 + $0x18] sm:$0xff]
    %v264 = vld [vmem:[#allocation3 + $0x20] sm:$0xff]
    %v265 = vld [vmem:[#allocation3 + $0x28] sm:$0xff]
    %v266 = vld [vmem:[#allocation3 + $0x30] sm:$0xff]
    %v267 = vld [vmem:[#allocation3 + $0x38] sm:$0xff]
    %v276 = vunpack.c.l.b16 %v260
    %v277 = vunpack.c.h.b16 %v260
    %v278 = vunpack.c.l.b16 %v261
    %v279 = vunpack.c.h.b16 %v261
    %v280 = vunpack.c.l.b16 %v262
    %v281 = vunpack.c.h.b16 %v262
    %v282 = vunpack.c.l.b16 %v263
    %v283 = vunpack.c.h.b16 %v263
    %v284 = vunpack.c.l.b16 %v264
    %v285 = vunpack.c.h.b16 %v264
    %v286 = vunpack.c.l.b16 %v265
    %v287 = vunpack.c.h.b16 %v265
    %v288 = vunpack.c.l.b16 %v266
    %v289 = vunpack.c.h.b16 %v266
    %v290 = vunpack.c.l.b16 %v267
    %v291 = vunpack.c.h.b16 %v267
    %v292 = vpack.c.b16 %v278, %v276
    %v293 = vpack.c.b16 %v279, %v277
    %v294 = vpack.c.b16 %v282, %v280
    %v295 = vpack.c.b16 %v283, %v281
    %v296 = vpack.c.b16 %v286, %v284
    %v297 = vpack.c.b16 %v287, %v285
    %v298 = vpack.c.b16 %v290, %v288
    %v299 = vpack.c.b16 %v291, %v289
    %vm308 = vcmask 523264
    %v310 = vsel %vm308, 0, 0
    %312 = vmatprep.subr.bf16.mxu0 0
    %313 = vmatpush1.bf16.msra.mxu0 0
    %314 = vmatprep.subr.bf16.mxu0 0
    %315 = vmatpush1.bf16.msra.mxu0 0
    %316 = vmatprep.subr.bf16.mxu0 0
    %317 = vmatpush1.bf16.msra.mxu0 0
    %318 = vmatprep.subr.bf16.mxu0 0
    %319 = vmatpush1.bf16.msra.mxu0 0
    %320 = vmatprep.subr.bf16.mxu0 %v299
    %321 = vmatpush1.bf16.msra.mxu0 %v298
    %322 = vmatprep.subr.bf16.mxu0 %v297
    %323 = vmatpush1.bf16.msra.mxu0 %v296
    %324 = vmatprep.subr.bf16.mxu0 %v295
    %325 = vmatpush1.bf16.msra.mxu0 %v294
    %326 = vmatprep.subr.bf16.mxu0 %v293
    %327 = vmatpush1.bf16.msra.mxu0 %v292
    %328 = vmatprep.subr.bf16.mxu0 0
    %329 = vmatpush2.bf16.msra.mxu0 0
    %330 = vmatprep.subr.bf16.mxu0 0
    %331 = vmatpush2.bf16.msra.mxu0 0
    %332 = vmatprep.subr.bf16.mxu0 0
    %333 = vmatpush2.bf16.msra.mxu0 0
    %334 = vmatprep.subr.bf16.mxu0 0
    %335 = vmatpush2.bf16.msra.mxu0 0
    %336 = vmatprep.subr.bf16.mxu0 0
    %337 = vmatpush2.bf16.msra.mxu0 0
    %338 = vmatprep.subr.bf16.mxu0 0
    %339 = vmatpush2.bf16.msra.mxu0 0
    %340 = vmatprep.subr.bf16.mxu0 0
    %341 = vmatpush2.bf16.msra.mxu0 0
    %342 = vmatprep.subr.bf16.mxu0 0
    %343 = vmatpush2.bf16.msra.mxu0 0
    %344 = vmatprep.mubr.bf16.mxu0 0
    %345 = vmatmul.mubr.bf16.gmra.mxu0 %v310
    %v346 = vpop.f32.mrf.mxu0
    %v347 = vadd.f32 0.0, %v346
    %v348 = vpop.f32.mrf.mxu0
    %v349 = vadd.f32 0.0, %v348
    %v350 = vpop.f32.mrf.mxu0
    %v351 = vpop.f32.mrf.mxu0
    %352 = vdwg.mxu0
    %v353 = vadd.f32 %v252, %v347
    %v354 = vadd.f32 %v254, %v349
    %v355 = vxor.u32 %v353, 2147483648
    %v356 = vxor.u32 %v354, 2147483648
    %v357 = vmul.f32 %v355, 1.442695
    %v358 = vpow.pop %v357
    %v359 = vmul.f32 %v356, 1.442695
    %v360 = vpow.pop %v359
    %v361 = vadd.f32 %v358, 1.0
    %v362 = vadd.f32 %v360, 1.0
    %v363 = vrcp.pop %v361
    %v364 = vmul.f32 1.0, %v363
    %v365 = vrcp.pop %v362
    %v366 = vmul.f32 1.0, %v365
    %v367 = vtanh.pop %v354
    %v368 = vmul.f32 %v364, 0.0
    %370 = vrot.lane.b32.xlu0 %v367, 64
    %v371 = vpop.permute.xlu0 %370
    %v373 = vmul.f32 %v364, %v371
    %375 = vrot.lane.b32.xlu0 %v373, 64
    %v376 = vpop.permute.xlu0 %375
    %v378 = vadd.f32 %v368, %v376
    %v379 = vtanh.pop %v378
    %381 = vrot.lane.b32.xlu0 %v379, 64
    %v382 = vpop.permute.xlu0 %381
    %v384 = vmul.f32 %v366, %v382
    %vm385 = vcmask 517120
    %386 = vst.msk [vmem:[#allocation2] sm:$0x3] %vm385, %v384
    %388 = vrot.lane.b32.xlu0 %v384, 64
    %v389 = vpop.permute.xlu0 %388
    %vm391 = vcmask 1041920
    %392 = vst.msk [vmem:[#allocation2 + $0xe] sm:$0x3] %vm391, %v389
    %v393 = vpack.c.bf16 %v384, %v384
    %v395 = vsel %vm308, %v393, 0
    %397 = vmatprep.subr.bf16.mxu0 0
    %398 = vmatpush1.bf16.msra.mxu0 0
    %399 = vmatprep.subr.bf16.mxu0 0
    %400 = vmatpush1.bf16.msra.mxu0 0
    %401 = vmatprep.subr.bf16.mxu0 0
    %402 = vmatpush1.bf16.msra.mxu0 0
    %403 = vmatprep.subr.bf16.mxu0 0
    %404 = vmatpush1.bf16.msra.mxu0 0
    %405 = vmatprep.subr.bf16.mxu0 %v299
    %406 = vmatpush1.bf16.msra.mxu0 %v298
    %407 = vmatprep.subr.bf16.mxu0 %v297
    %408 = vmatpush1.bf16.msra.mxu0 %v296
    %409 = vmatprep.subr.bf16.mxu0 %v295
    %410 = vmatpush1.bf16.msra.mxu0 %v294
    %411 = vmatprep.subr.bf16.mxu0 %v293
    %412 = vmatpush1.bf16.msra.mxu0 %v292
    %413 = vmatprep.subr.bf16.mxu0 0
    %414 = vmatpush2.bf16.msra.mxu0 0
    %415 = vmatprep.subr.bf16.mxu0 0
    %416 = vmatpush2.bf16.msra.mxu0 0
    %417 = vmatprep.subr.bf16.mxu0 0
    %418 = vmatpush2.bf16.msra.mxu0 0
    %419 = vmatprep.subr.bf16.mxu0 0
    %420 = vmatpush2.bf16.msra.mxu0 0
    %421 = vmatprep.subr.bf16.mxu0 0
    %422 = vmatpush2.bf16.msra.mxu0 0
    %423 = vmatprep.subr.bf16.mxu0 0
    %424 = vmatpush2.bf16.msra.mxu0 0
    %425 = vmatprep.subr.bf16.mxu0 0
    %426 = vmatpush2.bf16.msra.mxu0 0
    %427 = vmatprep.subr.bf16.mxu0 0
    %428 = vmatpush2.bf16.msra.mxu0 0
    %429 = vmatprep.mubr.bf16.mxu0 0
    %430 = vmatmul.mubr.bf16.gmra.mxu0 %v395
    %v431 = vpop.f32.mrf.mxu0
    %v432 = vadd.f32 0.0, %v431
    %v433 = vpop.f32.mrf.mxu0
    %v434 = vadd.f32 0.0, %v433
    %v435 = vpop.f32.mrf.mxu0
    %v436 = vpop.f32.mrf.mxu0
    %437 = vdwg.mxu0
    %v440 = vrot.slane %v432, 6
    %v441 = vrot.slane %v434, 6
    %v444 = vadd.f32 %v252, %v440
    %v445 = vadd.f32 %v254, %v441
    %v446 = vxor.u32 %v444, 2147483648
    %v447 = vxor.u32 %v445, 2147483648
    %v448 = vmul.f32 %v446, 1.442695
    %v449 = vpow.pop %v448
    %v450 = vmul.f32 %v447, 1.442695
    %v451 = vpow.pop %v450
    %v452 = vadd.f32 %v449, 1.0
    %v453 = vadd.f32 %v451, 1.0
    %v454 = vrcp.pop %v452
    %v455 = vmul.f32 1.0, %v454
    %v456 = vrcp.pop %v453
    %v457 = vmul.f32 1.0, %v456
    %v458 = vtanh.pop %v445
    %v460 = vrot.slane %v378, 6
    %v462 = vmul.f32 %v455, %v460
    %464 = vrot.lane.b32.xlu0 %v458, 64
    %v465 = vpop.permute.xlu0 %464
    %v467 = vmul.f32 %v455, %v465
    %469 = vrot.lane.b32.xlu0 %v467, 64
    %v470 = vpop.permute.xlu0 %469
    %v472 = vadd.f32 %v462, %v470
    %v473 = vtanh.pop %v472
    %475 = vrot.lane.b32.xlu0 %v473, 64
    %v476 = vpop.permute.xlu0 %475
    %v478 = vmul.f32 %v457, %v476
    %vm479 = vcmask 519170
    %480 = vst.msk [vmem:[#allocation2] sm:$0xc] %vm479, %v478
    %482 = vrot.lane.b32.xlu0 %v478, 64
    %v483 = vpop.permute.xlu0 %482
    %vm485 = vcmask 1043970
    %486 = vst.msk [vmem:[#allocation2 + $0xa] sm:$0xc] %vm485, %v483
    %v487 = vpack.c.bf16 %v478, %v478
    %v489 = vrot.slane %v487, 1
    %v491 = vsel %vm308, %v489, 0
    %493 = vmatprep.subr.bf16.mxu0 0
    %494 = vmatpush1.bf16.msra.mxu0 0
    %495 = vmatprep.subr.bf16.mxu0 0
    %496 = vmatpush1.bf16.msra.mxu0 0
    %497 = vmatprep.subr.bf16.mxu0 0
    %498 = vmatpush1.bf16.msra.mxu0 0
    %499 = vmatprep.subr.bf16.mxu0 0
    %500 = vmatpush1.bf16.msra.mxu0 0
    %501 = vmatprep.subr.bf16.mxu0 %v299
    %502 = vmatpush1.bf16.msra.mxu0 %v298
    %503 = vmatprep.subr.bf16.mxu0 %v297
    %504 = vmatpush1.bf16.msra.mxu0 %v296
    %505 = vmatprep.subr.bf16.mxu0 %v295
    %506 = vmatpush1.bf16.msra.mxu0 %v294
    %507 = vmatprep.subr.bf16.mxu0 %v293
    %508 = vmatpush1.bf16.msra.mxu0 %v292
    %509 = vmatprep.subr.bf16.mxu0 0
    %510 = vmatpush2.bf16.msra.mxu0 0
    %511 = vmatprep.subr.bf16.mxu0 0
    %512 = vmatpush2.bf16.msra.mxu0 0
    %513 = vmatprep.subr.bf16.mxu0 0
    %514 = vmatpush2.bf16.msra.mxu0 0
    %515 = vmatprep.subr.bf16.mxu0 0
    %516 = vmatpush2.bf16.msra.mxu0 0
    %517 = vmatprep.subr.bf16.mxu0 0
    %518 = vmatpush2.bf16.msra.mxu0 0
    %519 = vmatprep.subr.bf16.mxu0 0
    %520 = vmatpush2.bf16.msra.mxu0 0
    %521 = vmatprep.subr.bf16.mxu0 0
    %522 = vmatpush2.bf16.msra.mxu0 0
    %523 = vmatprep.subr.bf16.mxu0 0
    %524 = vmatpush2.bf16.msra.mxu0 0
    %525 = vmatprep.mubr.bf16.mxu0 0
    %526 = vmatmul.mubr.bf16.gmra.mxu0 %v491
    %v527 = vpop.f32.mrf.mxu0
    %v528 = vadd.f32 0.0, %v527
    %v529 = vpop.f32.mrf.mxu0
    %v530 = vadd.f32 0.0, %v529
    %v531 = vpop.f32.mrf.mxu0
    %v532 = vpop.f32.mrf.mxu0
    %533 = vdwg.mxu0
    %v536 = vrot.slane %v528, 4
    %v537 = vrot.slane %v530, 4
    %v540 = vadd.f32 %v252, %v536
    %v541 = vadd.f32 %v254, %v537
    %v542 = vxor.u32 %v540, 2147483648
    %v543 = vxor.u32 %v541, 2147483648
    %v544 = vmul.f32 %v542, 1.442695
    %v545 = vpow.pop %v544
    %v546 = vmul.f32 %v543, 1.442695
    %v547 = vpow.pop %v546
    %v548 = vadd.f32 %v545, 1.0
    %v549 = vadd.f32 %v547, 1.0
    %v550 = vrcp.pop %v548
    %v551 = vmul.f32 1.0, %v550
    %v552 = vrcp.pop %v549
    %v553 = vmul.f32 1.0, %v552
    %v554 = vtanh.pop %v541
    %v556 = vrot.slane %v472, 6
    %v558 = vmul.f32 %v551, %v556
    %560 = vrot.lane.b32.xlu0 %v554, 64
    %v561 = vpop.permute.xlu0 %560
    %v563 = vmul.f32 %v551, %v561
    %565 = vrot.lane.b32.xlu0 %v563, 64
    %v566 = vpop.permute.xlu0 %565
    %v568 = vadd.f32 %v558, %v566
    %v569 = vtanh.pop %v568
    %571 = vrot.lane.b32.xlu0 %v569, 64
    %v572 = vpop.permute.xlu0 %571
    %v574 = vmul.f32 %v553, %v572
    %vm575 = vcmask 521220
    %576 = vst.msk [vmem:[#allocation2] sm:$0x30] %vm575, %v574
    %578 = vrot.lane.b32.xlu0 %v574, 64
    %v579 = vpop.permute.xlu0 %578
    %vm581 = vcmask 1046020
    %582 = vst.msk [vmem:[#allocation2 + $0x6] sm:$0x30] %vm581, %v579
    %v583 = vpack.c.bf16 %v574, %v574
    %v585 = vrot.slane %v583, 2
    %v587 = vsel %vm308, %v585, 0
    %589 = vmatprep.subr.bf16.mxu0 0
    %590 = vmatpush1.bf16.msra.mxu0 0
    %591 = vmatprep.subr.bf16.mxu0 0
    %592 = vmatpush1.bf16.msra.mxu0 0
    %593 = vmatprep.subr.bf16.mxu0 0
    %594 = vmatpush1.bf16.msra.mxu0 0
    %595 = vmatprep.subr.bf16.mxu0 0
    %596 = vmatpush1.bf16.msra.mxu0 0
    %597 = vmatprep.subr.bf16.mxu0 %v299
    %598 = vmatpush1.bf16.msra.mxu0 %v298
    %599 = vmatprep.subr.bf16.mxu0 %v297
    %600 = vmatpush1.bf16.msra.mxu0 %v296
    %601 = vmatprep.subr.bf16.mxu0 %v295
    %602 = vmatpush1.bf16.msra.mxu0 %v294
    %603 = vmatprep.subr.bf16.mxu0 %v293
    %604 = vmatpush1.bf16.msra.mxu0 %v292
    %605 = vmatprep.subr.bf16.mxu0 0
    %606 = vmatpush2.bf16.msra.mxu0 0
    %607 = vmatprep.subr.bf16.mxu0 0
    %608 = vmatpush2.bf16.msra.mxu0 0
    %609 = vmatprep.subr.bf16.mxu0 0
    %610 = vmatpush2.bf16.msra.mxu0 0
    %611 = vmatprep.subr.bf16.mxu0 0
    %612 = vmatpush2.bf16.msra.mxu0 0
    %613 = vmatprep.subr.bf16.mxu0 0
    %614 = vmatpush2.bf16.msra.mxu0 0
    %615 = vmatprep.subr.bf16.mxu0 0
    %616 = vmatpush2.bf16.msra.mxu0 0
    %617 = vmatprep.subr.bf16.mxu0 0
    %618 = vmatpush2.bf16.msra.mxu0 0
    %619 = vmatprep.subr.bf16.mxu0 0
    %620 = vmatpush2.bf16.msra.mxu0 0
    %621 = vmatprep.mubr.bf16.mxu0 0
    %622 = vmatmul.mubr.bf16.gmra.mxu0 %v587
    %v623 = vpop.f32.mrf.mxu0
    %v624 = vadd.f32 0.0, %v623
    %v625 = vpop.f32.mrf.mxu0
    %v626 = vadd.f32 0.0, %v625
    %v627 = vpop.f32.mrf.mxu0
    %v628 = vpop.f32.mrf.mxu0
    %629 = vdwg.mxu0
    %v632 = vrot.slane %v624, 2
    %v633 = vrot.slane %v626, 2
    %v636 = vadd.f32 %v252, %v632
    %v637 = vadd.f32 %v254, %v633
    %v638 = vxor.u32 %v636, 2147483648
    %v639 = vxor.u32 %v637, 2147483648
    %v640 = vmul.f32 %v638, 1.442695
    %v641 = vpow.pop %v640
    %v642 = vmul.f32 %v639, 1.442695
    %v643 = vpow.pop %v642
    %v644 = vadd.f32 %v641, 1.0
    %v645 = vadd.f32 %v643, 1.0
    %v646 = vrcp.pop %v644
    %v647 = vmul.f32 1.0, %v646
    %v648 = vrcp.pop %v645
    %v649 = vmul.f32 1.0, %v648
    %v650 = vtanh.pop %v637
    %v652 = vrot.slane %v568, 6
    %v654 = vmul.f32 %v647, %v652
    %656 = vrot.lane.b32.xlu0 %v650, 64
    %v657 = vpop.permute.xlu0 %656
    %v659 = vmul.f32 %v647, %v657
    %661 = vrot.lane.b32.xlu0 %v659, 64
    %v662 = vpop.permute.xlu0 %661
    %v664 = vadd.f32 %v654, %v662
    %v665 = vtanh.pop %v664
    %667 = vrot.lane.b32.xlu0 %v665, 64
    %v668 = vpop.permute.xlu0 %667
    %v670 = vmul.f32 %v649, %v668
    %vm671 = vcmask 523270
    %672 = vst.msk [vmem:[#allocation2] sm:$0xc0] %vm671, %v670
    %674 = vrot.lane.b32.xlu0 %v670, 64
    %v675 = vpop.permute.xlu0 %674
    %vm677 = vcmask 1048070
    %678 = vst.msk [vmem:[#allocation2 + $0x2] sm:$0xc0] %vm677, %v675
    %v679 = vpack.c.bf16 %v670, %v670
    %v681 = vrot.slane %v679, 3
    %v683 = vsel %vm308, %v681, 0
    %685 = vmatprep.subr.bf16.mxu0 0
    %686 = vmatpush1.bf16.msra.mxu0 0
    %687 = vmatprep.subr.bf16.mxu0 0
    %688 = vmatpush1.bf16.msra.mxu0 0
    %689 = vmatprep.subr.bf16.mxu0 0
    %690 = vmatpush1.bf16.msra.mxu0 0
    %691 = vmatprep.subr.bf16.mxu0 0
    %692 = vmatpush1.bf16.msra.mxu0 0
    %693 = vmatprep.subr.bf16.mxu0 %v299
    %694 = vmatpush1.bf16.msra.mxu0 %v298
    %695 = vmatprep.subr.bf16.mxu0 %v297
    %696 = vmatpush1.bf16.msra.mxu0 %v296
    %697 = vmatprep.subr.bf16.mxu0 %v295
    %698 = vmatpush1.bf16.msra.mxu0 %v294
    %699 = vmatprep.subr.bf16.mxu0 %v293
    %700 = vmatpush1.bf16.msra.mxu0 %v292
    %701 = vmatprep.subr.bf16.mxu0 0
    %702 = vmatpush2.bf16.msra.mxu0 0
    %703 = vmatprep.subr.bf16.mxu0 0
    %704 = vmatpush2.bf16.msra.mxu0 0
    %705 = vmatprep.subr.bf16.mxu0 0
    %706 = vmatpush2.bf16.msra.mxu0 0
    %707 = vmatprep.subr.bf16.mxu0 0
    %708 = vmatpush2.bf16.msra.mxu0 0
    %709 = vmatprep.subr.bf16.mxu0 0
    %710 = vmatpush2.bf16.msra.mxu0 0
    %711 = vmatprep.subr.bf16.mxu0 0
    %712 = vmatpush2.bf16.msra.mxu0 0
    %713 = vmatprep.subr.bf16.mxu0 0
    %714 = vmatpush2.bf16.msra.mxu0 0
    %715 = vmatprep.subr.bf16.mxu0 0
    %716 = vmatpush2.bf16.msra.mxu0 0
    %717 = vmatprep.mubr.bf16.mxu0 0
    %718 = vmatmul.mubr.bf16.gmra.mxu0 %v683
    %v719 = vpop.f32.mrf.mxu0
    %v720 = vadd.f32 0.0, %v719
    %v721 = vpop.f32.mrf.mxu0
    %v722 = vadd.f32 0.0, %v721
    %v723 = vpop.f32.mrf.mxu0
    %v724 = vpop.f32.mrf.mxu0
    %725 = vdwg.mxu0
    %v726 = vadd.f32 %v256, %v720
    %v727 = vadd.f32 %v258, %v722
    %v728 = vxor.u32 %v726, 2147483648
    %v729 = vxor.u32 %v727, 2147483648
    %v730 = vmul.f32 %v728, 1.442695
    %v731 = vpow.pop %v730
    %v732 = vmul.f32 %v729, 1.442695
    %v733 = vpow.pop %v732
    %v734 = vadd.f32 %v731, 1.0
    %v735 = vadd.f32 %v733, 1.0
    %v736 = vrcp.pop %v734
    %v737 = vmul.f32 1.0, %v736
    %v738 = vrcp.pop %v735
    %v739 = vmul.f32 1.0, %v738
    %v740 = vtanh.pop %v727
    %v742 = vrot.slane %v664, 6
    %v744 = vmul.f32 %v737, %v742
    %746 = vrot.lane.b32.xlu0 %v740, 64
    %v747 = vpop.permute.xlu0 %746
    %v749 = vmul.f32 %v737, %v747
    %751 = vrot.lane.b32.xlu0 %v749, 64
    %v752 = vpop.permute.xlu0 %751
    %v754 = vadd.f32 %v744, %v752
    %v755 = vtanh.pop %v754
    %757 = vrot.lane.b32.xlu0 %v755, 64
    %v758 = vpop.permute.xlu0 %757
    %v760 = vmul.f32 %v739, %v758
    %761 = vst.msk [vmem:[#allocation2 + $0x8] sm:$0x3] %vm385, %v760
    %763 = vrot.lane.b32.xlu0 %v760, 64
    %v764 = vpop.permute.xlu0 %763
    %766 = vst.msk [vmem:[#allocation2 + $0x6] sm:$0x3] %vm391, %v764
    %v767 = vpack.c.bf16 %v760, %v760
    %v769 = vsel %vm308, %v767, 0
    %771 = vmatprep.subr.bf16.mxu0 0
    %772 = vmatpush1.bf16.msra.mxu0 0
    %773 = vmatprep.subr.bf16.mxu0 0
    %774 = vmatpush1.bf16.msra.mxu0 0
    %775 = vmatprep.subr.bf16.mxu0 0
    %776 = vmatpush1.bf16.msra.mxu0 0
    %777 = vmatprep.subr.bf16.mxu0 0
    %778 = vmatpush1.bf16.msra.mxu0 0
    %779 = vmatprep.subr.bf16.mxu0 %v299
    %780 = vmatpush1.bf16.msra.mxu0 %v298
    %781 = vmatprep.subr.bf16.mxu0 %v297
    %782 = vmatpush1.bf16.msra.mxu0 %v296
    %783 = vmatprep.subr.bf16.mxu0 %v295
    %784 = vmatpush1.bf16.msra.mxu0 %v294
    %785 = vmatprep.subr.bf16.mxu0 %v293
    %786 = vmatpush1.bf16.msra.mxu0 %v292
    %787 = vmatprep.subr.bf16.mxu0 0
    %788 = vmatpush2.bf16.msra.mxu0 0
    %789 = vmatprep.subr.bf16.mxu0 0
    %790 = vmatpush2.bf16.msra.mxu0 0
    %791 = vmatprep.subr.bf16.mxu0 0
    %792 = vmatpush2.bf16.msra.mxu0 0
    %793 = vmatprep.subr.bf16.mxu0 0
    %794 = vmatpush2.bf16.msra.mxu0 0
    %795 = vmatprep.subr.bf16.mxu0 0
    %796 = vmatpush2.bf16.msra.mxu0 0
    %797 = vmatprep.subr.bf16.mxu0 0
    %798 = vmatpush2.bf16.msra.mxu0 0
    %799 = vmatprep.subr.bf16.mxu0 0
    %800 = vmatpush2.bf16.msra.mxu0 0
    %801 = vmatprep.subr.bf16.mxu0 0
    %802 = vmatpush2.bf16.msra.mxu0 0
    %803 = vmatprep.mubr.bf16.mxu0 0
    %804 = vmatmul.mubr.bf16.gmra.mxu0 %v769
    %v805 = vpop.f32.mrf.mxu0
    %v806 = vadd.f32 0.0, %v805
    %v807 = vpop.f32.mrf.mxu0
    %v808 = vadd.f32 0.0, %v807
    %v809 = vpop.f32.mrf.mxu0
    %v810 = vpop.f32.mrf.mxu0
    %811 = vdwg.mxu0
    %v814 = vrot.slane %v806, 6
    %v815 = vrot.slane %v808, 6
    %v818 = vadd.f32 %v256, %v814
    %v819 = vadd.f32 %v258, %v815
    %v820 = vxor.u32 %v818, 2147483648
    %v821 = vxor.u32 %v819, 2147483648
    %v822 = vmul.f32 %v820, 1.442695
    %v823 = vpow.pop %v822
    %v824 = vmul.f32 %v821, 1.442695
    %v825 = vpow.pop %v824
    %v826 = vadd.f32 %v823, 1.0
    %v827 = vadd.f32 %v825, 1.0
    %v828 = vrcp.pop %v826
    %v829 = vmul.f32 1.0, %v828
    %v830 = vrcp.pop %v827
    %v831 = vmul.f32 1.0, %v830
    %v832 = vtanh.pop %v819
    %v834 = vrot.slane %v754, 6
    %v836 = vmul.f32 %v829, %v834
    %838 = vrot.lane.b32.xlu0 %v832, 64
    %v839 = vpop.permute.xlu0 %838
    %v841 = vmul.f32 %v829, %v839
    %843 = vrot.lane.b32.xlu0 %v841, 64
    %v844 = vpop.permute.xlu0 %843
    %v846 = vadd.f32 %v836, %v844
    %v847 = vtanh.pop %v846
    %849 = vrot.lane.b32.xlu0 %v847, 64
    %v850 = vpop.permute.xlu0 %849
    %v852 = vmul.f32 %v831, %v850
    %853 = vst.msk [vmem:[#allocation2 + $0x8] sm:$0xc] %vm479, %v852
    %855 = vrot.lane.b32.xlu0 %v852, 64
    %v856 = vpop.permute.xlu0 %855
    %858 = vst.msk [vmem:[#allocation2 + $0x2] sm:$0xc] %vm485, %v856
    %v859 = vpack.c.bf16 %v852, %v852
    %v861 = vrot.slane %v859, 1
    %v863 = vsel %vm308, %v861, 0
    %865 = vmatprep.subr.bf16.mxu0 0
    %866 = vmatpush1.bf16.msra.mxu0 0
    %867 = vmatprep.subr.bf16.mxu0 0
    %868 = vmatpush1.bf16.msra.mxu0 0
    %869 = vmatprep.subr.bf16.mxu0 0
    %870 = vmatpush1.bf16.msra.mxu0 0
    %871 = vmatprep.subr.bf16.mxu0 0
    %872 = vmatpush1.bf16.msra.mxu0 0
    %873 = vmatprep.subr.bf16.mxu0 %v299
    %874 = vmatpush1.bf16.msra.mxu0 %v298
    %875 = vmatprep.subr.bf16.mxu0 %v297
    %876 = vmatpush1.bf16.msra.mxu0 %v296
    %877 = vmatprep.subr.bf16.mxu0 %v295
    %878 = vmatpush1.bf16.msra.mxu0 %v294
    %879 = vmatprep.subr.bf16.mxu0 %v293
    %880 = vmatpush1.bf16.msra.mxu0 %v292
    %881 = vmatprep.subr.bf16.mxu0 0
    %882 = vmatpush2.bf16.msra.mxu0 0
    %883 = vmatprep.subr.bf16.mxu0 0
    %884 = vmatpush2.bf16.msra.mxu0 0
    %885 = vmatprep.subr.bf16.mxu0 0
    %886 = vmatpush2.bf16.msra.mxu0 0
    %887 = vmatprep.subr.bf16.mxu0 0
    %888 = vmatpush2.bf16.msra.mxu0 0
    %889 = vmatprep.subr.bf16.mxu0 0
    %890 = vmatpush2.bf16.msra.mxu0 0
    %891 = vmatprep.subr.bf16.mxu0 0
    %892 = vmatpush2.bf16.msra.mxu0 0
    %893 = vmatprep.subr.bf16.mxu0 0
    %894 = vmatpush2.bf16.msra.mxu0 0
    %895 = vmatprep.subr.bf16.mxu0 0
    %896 = vmatpush2.bf16.msra.mxu0 0
    %897 = vmatprep.mubr.bf16.mxu0 0
    %898 = vmatmul.mubr.bf16.gmra.mxu0 %v863
    %v899 = vpop.f32.mrf.mxu0
    %v900 = vadd.f32 0.0, %v899
    %v901 = vpop.f32.mrf.mxu0
    %v902 = vadd.f32 0.0, %v901
    %v903 = vpop.f32.mrf.mxu0
    %v904 = vpop.f32.mrf.mxu0
    %905 = vdwg.mxu0
    %v908 = vrot.slane %v900, 4
    %v909 = vrot.slane %v902, 4
    %v912 = vadd.f32 %v256, %v908
    %v913 = vadd.f32 %v258, %v909
    %v914 = vxor.u32 %v912, 2147483648
    %v915 = vxor.u32 %v913, 2147483648
    %v916 = vmul.f32 %v914, 1.442695
    %v917 = vpow.pop %v916
    %v918 = vmul.f32 %v915, 1.442695
    %v919 = vpow.pop %v918
    %v920 = vadd.f32 %v917, 1.0
    %v921 = vadd.f32 %v919, 1.0
    %v922 = vrcp.pop %v920
    %v923 = vmul.f32 1.0, %v922
    %v924 = vrcp.pop %v921
    %v925 = vmul.f32 1.0, %v924
    %v926 = vtanh.pop %v913
    %v928 = vrot.slane %v846, 6
    %v930 = vmul.f32 %v923, %v928
    %932 = vrot.lane.b32.xlu0 %v926, 64
    %v933 = vpop.permute.xlu0 %932
    %v935 = vmul.f32 %v923, %v933
    %937 = vrot.lane.b32.xlu0 %v935, 64
    %v938 = vpop.permute.xlu0 %937
    %v940 = vadd.f32 %v930, %v938
    %v941 = vtanh.pop %v940
    %943 = vrot.lane.b32.xlu0 %v941, 64
    %v944 = vpop.permute.xlu0 %943
    %v946 = vmul.f32 %v925, %v944
    %947 = vst.msk [vmem:[#allocation2 + $0x8] sm:$0x30] %vm575, %v946
    %949 = vrot.lane.b32.xlu0 %v946, 64
    %v950 = vpop.permute.xlu0 %949
    %952 = vst.msk [vmem:[#allocation2 - $0x2] sm:$0x30] %vm581, %v950
    %v953 = vpack.c.bf16 %v946, %v946
    %v955 = vrot.slane %v953, 2
    %v957 = vsel %vm308, %v955, 0
    %959 = vmatprep.subr.bf16.mxu0 0
    %960 = vmatpush1.bf16.msra.mxu0 0
    %961 = vmatprep.subr.bf16.mxu0 0
    %962 = vmatpush1.bf16.msra.mxu0 0
    %963 = vmatprep.subr.bf16.mxu0 0
    %964 = vmatpush1.bf16.msra.mxu0 0
    %965 = vmatprep.subr.bf16.mxu0 0
    %966 = vmatpush1.bf16.msra.mxu0 0
    %967 = vmatprep.subr.bf16.mxu0 %v299
    %968 = vmatpush1.bf16.msra.mxu0 %v298
    %969 = vmatprep.subr.bf16.mxu0 %v297
    %970 = vmatpush1.bf16.msra.mxu0 %v296
    %971 = vmatprep.subr.bf16.mxu0 %v295
    %972 = vmatpush1.bf16.msra.mxu0 %v294
    %973 = vmatprep.subr.bf16.mxu0 %v293
    %974 = vmatpush1.bf16.msra.mxu0 %v292
    %975 = vmatprep.subr.bf16.mxu0 0
    %976 = vmatpush2.bf16.msra.mxu0 0
    %977 = vmatprep.subr.bf16.mxu0 0
    %978 = vmatpush2.bf16.msra.mxu0 0
    %979 = vmatprep.subr.bf16.mxu0 0
    %980 = vmatpush2.bf16.msra.mxu0 0
    %981 = vmatprep.subr.bf16.mxu0 0
    %982 = vmatpush2.bf16.msra.mxu0 0
    %983 = vmatprep.subr.bf16.mxu0 0
    %984 = vmatpush2.bf16.msra.mxu0 0
    %985 = vmatprep.subr.bf16.mxu0 0
    %986 = vmatpush2.bf16.msra.mxu0 0
    %987 = vmatprep.subr.bf16.mxu0 0
    %988 = vmatpush2.bf16.msra.mxu0 0
    %989 = vmatprep.subr.bf16.mxu0 0
    %990 = vmatpush2.bf16.msra.mxu0 0
    %991 = vmatprep.mubr.bf16.mxu0 0
    %992 = vmatmul.mubr.bf16.gmra.mxu0 %v957
    %v993 = vpop.f32.mrf.mxu0
    %v994 = vadd.f32 0.0, %v993
    %v995 = vpop.f32.mrf.mxu0
    %v996 = vadd.f32 0.0, %v995
    %v997 = vpop.f32.mrf.mxu0
    %v998 = vpop.f32.mrf.mxu0
    %999 = vdwg.mxu0
    %v1002 = vrot.slane %v994, 2
    %v1003 = vrot.slane %v996, 2
    %v1006 = vadd.f32 %v256, %v1002
    %v1007 = vadd.f32 %v258, %v1003
    %v1008 = vxor.u32 %v1006, 2147483648
    %v1009 = vxor.u32 %v1007, 2147483648
    %v1010 = vmul.f32 %v1008, 1.442695
    %v1011 = vpow.pop %v1010
    %v1012 = vmul.f32 %v1009, 1.442695
    %v1013 = vpow.pop %v1012
    %v1014 = vadd.f32 %v1011, 1.0
    %v1015 = vadd.f32 %v1013, 1.0
    %v1016 = vrcp.pop %v1014
    %v1017 = vmul.f32 1.0, %v1016
    %v1018 = vrcp.pop %v1015
    %v1019 = vmul.f32 1.0, %v1018
    %v1020 = vtanh.pop %v1007
    %v1022 = vrot.slane %v940, 6
    %v1024 = vmul.f32 %v1017, %v1022
    %1026 = vrot.lane.b32.xlu0 %v1020, 64
    %v1027 = vpop.permute.xlu0 %1026
    %v1029 = vmul.f32 %v1017, %v1027
    %1031 = vrot.lane.b32.xlu0 %v1029, 64
    %v1032 = vpop.permute.xlu0 %1031
    %v1034 = vadd.f32 %v1024, %v1032
    %v1035 = vtanh.pop %v1034
    %1037 = vrot.lane.b32.xlu0 %v1035, 64
    %v1038 = vpop.permute.xlu0 %1037
    %v1040 = vmul.f32 %v1019, %v1038
    %1041 = vst.msk [vmem:[#allocation2 + $0x8] sm:$0xc0] %vm671, %v1040
    %1043 = vrot.lane.b32.xlu0 %v1040, 64
    %v1044 = vpop.permute.xlu0 %1043
    %1046 = vst.msk [vmem:[#allocation2 - $0x6] sm:$0xc0] %vm677, %v1044
    %v1047 = vld [vmem:[#allocation2] sm:$0xff]
    %v1048 = vld [vmem:[#allocation2 + $0x8] sm:$0xff]
    %v1049 = vpack.c.bf16 %v1048, %v1047
    %v1050 = vld [vmem:[#allocation6] sm:$0xff]
    %v1051 = vld [vmem:[#allocation6 + $0x8] sm:$0xff]
    %v1052 = vld [vmem:[#allocation6 + $0x10] sm:$0xff]
    %v1053 = vld [vmem:[#allocation6 + $0x18] sm:$0xff]
    %v1054 = vld [vmem:[#allocation6 + $0x20] sm:$0xff]
    %v1055 = vld [vmem:[#allocation6 + $0x28] sm:$0xff]
    %v1056 = vld [vmem:[#allocation6 + $0x30] sm:$0xff]
    %v1057 = vld [vmem:[#allocation6 + $0x38] sm:$0xff]
    %v1058 = vld [vmem:[#allocation6 + $0x40] sm:$0xff]
    %v1059 = vld [vmem:[#allocation6 + $0x48] sm:$0xff]
    %v1060 = vld [vmem:[#allocation6 + $0x50] sm:$0xff]
    %v1061 = vld [vmem:[#allocation6 + $0x58] sm:$0xff]
    %v1062 = vld [vmem:[#allocation6 + $0x60] sm:$0xff]
    %v1063 = vld [vmem:[#allocation6 + $0x68] sm:$0xff]
    %v1064 = vld [vmem:[#allocation6 + $0x70] sm:$0xff]
    %v1065 = vld [vmem:[#allocation6 + $0x78] sm:$0xff]
    %v1066 = vld [vmem:[%s5] sm:$0x3]
    %v1068 = vlaneseq
    %v1069 = vshrl.u32 %v1068, 7
    %v1070 = vsub.s32 0, %v1069
    %v1071 = vrot.slane %v1066, %v1070
    %v1072 = vlaneseq
    %v1073 = vshrl.u32 %v1072, 7
    %v1074 = vsub.s32 1, %v1073
    %v1075 = vrot.slane %v1066, %v1074
    %v1094 = vunpack.c.l.b16 %v1050
    %v1095 = vunpack.c.h.b16 %v1050
    %v1096 = vunpack.c.l.b16 %v1051
    %v1097 = vunpack.c.h.b16 %v1051
    %v1098 = vunpack.c.l.b16 %v1052
    %v1099 = vunpack.c.h.b16 %v1052
    %v1100 = vunpack.c.l.b16 %v1053
    %v1101 = vunpack.c.h.b16 %v1053
    %v1102 = vunpack.c.l.b16 %v1054
    %v1103 = vunpack.c.h.b16 %v1054
    %v1104 = vunpack.c.l.b16 %v1055
    %v1105 = vunpack.c.h.b16 %v1055
    %v1106 = vunpack.c.l.b16 %v1056
    %v1107 = vunpack.c.h.b16 %v1056
    %v1108 = vunpack.c.l.b16 %v1057
    %v1109 = vunpack.c.h.b16 %v1057
    %v1110 = vunpack.c.l.b16 %v1058
    %v1111 = vunpack.c.h.b16 %v1058
    %v1112 = vunpack.c.l.b16 %v1059
    %v1113 = vunpack.c.h.b16 %v1059
    %v1114 = vunpack.c.l.b16 %v1060
    %v1115 = vunpack.c.h.b16 %v1060
    %v1116 = vunpack.c.l.b16 %v1061
    %v1117 = vunpack.c.h.b16 %v1061
    %v1118 = vunpack.c.l.b16 %v1062
    %v1119 = vunpack.c.h.b16 %v1062
    %v1120 = vunpack.c.l.b16 %v1063
    %v1121 = vunpack.c.h.b16 %v1063
    %v1122 = vunpack.c.l.b16 %v1064
    %v1123 = vunpack.c.h.b16 %v1064
    %v1124 = vunpack.c.l.b16 %v1065
    %v1125 = vunpack.c.h.b16 %v1065
    %v1126 = vpack.c.b16 %v1096, %v1094
    %v1127 = vpack.c.b16 %v1097, %v1095
    %v1128 = vpack.c.b16 %v1100, %v1098
    %v1129 = vpack.c.b16 %v1101, %v1099
    %v1130 = vpack.c.b16 %v1104, %v1102
    %v1131 = vpack.c.b16 %v1105, %v1103
    %v1132 = vpack.c.b16 %v1108, %v1106
    %v1133 = vpack.c.b16 %v1109, %v1107
    %v1134 = vpack.c.b16 %v1112, %v1110
    %v1135 = vpack.c.b16 %v1113, %v1111
    %v1136 = vpack.c.b16 %v1116, %v1114
    %v1137 = vpack.c.b16 %v1117, %v1115
    %v1138 = vpack.c.b16 %v1120, %v1118
    %v1139 = vpack.c.b16 %v1121, %v1119
    %v1140 = vpack.c.b16 %v1124, %v1122
    %v1141 = vpack.c.b16 %v1125, %v1123
    %1158 = vmatprep.subr.bf16.mxu0 %v1141
    %1159 = vmatpush1.bf16.msra.mxu0 %v1140
    %1160 = vmatprep.subr.bf16.mxu0 %v1139
    %1161 = vmatpush1.bf16.msra.mxu0 %v1138
    %1162 = vmatprep.subr.bf16.mxu0 %v1137
    %1163 = vmatpush1.bf16.msra.mxu0 %v1136
    %1164 = vmatprep.subr.bf16.mxu0 %v1135
    %1165 = vmatpush1.bf16.msra.mxu0 %v1134
    %1166 = vmatprep.subr.bf16.mxu0 %v1133
    %1167 = vmatpush1.bf16.msra.mxu0 %v1132
    %1168 = vmatprep.subr.bf16.mxu0 %v1131
    %1169 = vmatpush1.bf16.msra.mxu0 %v1130
    %1170 = vmatprep.subr.bf16.mxu0 %v1129
    %1171 = vmatpush1.bf16.msra.mxu0 %v1128
    %1172 = vmatprep.subr.bf16.mxu0 %v1127
    %1173 = vmatpush1.bf16.msra.mxu0 %v1126
    %1174 = vmatprep.subr.bf16.mxu0 0
    %1175 = vmatpush2.bf16.msra.mxu0 0
    %1176 = vmatprep.subr.bf16.mxu0 0
    %1177 = vmatpush2.bf16.msra.mxu0 0
    %1178 = vmatprep.subr.bf16.mxu0 0
    %1179 = vmatpush2.bf16.msra.mxu0 0
    %1180 = vmatprep.subr.bf16.mxu0 0
    %1181 = vmatpush2.bf16.msra.mxu0 0
    %1182 = vmatprep.subr.bf16.mxu0 0
    %1183 = vmatpush2.bf16.msra.mxu0 0
    %1184 = vmatprep.subr.bf16.mxu0 0
    %1185 = vmatpush2.bf16.msra.mxu0 0
    %1186 = vmatprep.subr.bf16.mxu0 0
    %1187 = vmatpush2.bf16.msra.mxu0 0
    %1188 = vmatprep.subr.bf16.mxu0 0
    %1189 = vmatpush2.bf16.msra.mxu0 0
    %1190 = vmatprep.mubr.bf16.mxu0 0
    %1191 = vmatmul.mubr.bf16.gmra.mxu0 %v1049
    %v1192 = vpop.f32.mrf.mxu0
    %v1193 = vadd.f32 %v1071, %v1192
    %v1194 = vpop.f32.mrf.mxu0
    %v1195 = vadd.f32 %v1075, %v1194
    %v1196 = vpop.f32.mrf.mxu0
    %v1197 = vadd.f32 %v1071, %v1196
    %v1198 = vpop.f32.mrf.mxu0
    %v1199 = vadd.f32 %v1075, %v1198
    %1200 = vdwg.mxu0
    %v1201 = vld [vmem:[#allocation8] sm:$0xff]
    %v1202 = vld [vmem:[#allocation8 + $0x8] sm:$0xff]
    %v1203 = vld [vmem:[#allocation8 + $0x10] sm:$0xff]
    %v1204 = vld [vmem:[#allocation8 + $0x18] sm:$0xff]
    %v1205 = vld [vmem:[#allocation8 + $0x20] sm:$0xff]
    %v1206 = vld [vmem:[#allocation8 + $0x28] sm:$0xff]
    %v1207 = vld [vmem:[#allocation8 + $0x30] sm:$0xff]
    %v1208 = vld [vmem:[#allocation8 + $0x38] sm:$0xff]
    %v1217 = vunpack.c.l.b16 %v1201
    %v1218 = vunpack.c.h.b16 %v1201
    %v1219 = vunpack.c.l.b16 %v1202
    %v1220 = vunpack.c.h.b16 %v1202
    %v1221 = vunpack.c.l.b16 %v1203
    %v1222 = vunpack.c.h.b16 %v1203
    %v1223 = vunpack.c.l.b16 %v1204
    %v1224 = vunpack.c.h.b16 %v1204
    %v1225 = vunpack.c.l.b16 %v1205
    %v1226 = vunpack.c.h.b16 %v1205
    %v1227 = vunpack.c.l.b16 %v1206
    %v1228 = vunpack.c.h.b16 %v1206
    %v1229 = vunpack.c.l.b16 %v1207
    %v1230 = vunpack.c.h.b16 %v1207
    %v1231 = vunpack.c.l.b16 %v1208
    %v1232 = vunpack.c.h.b16 %v1208
    %v1233 = vpack.c.b16 %v1219, %v1217
    %v1234 = vpack.c.b16 %v1220, %v1218
    %v1235 = vpack.c.b16 %v1223, %v1221
    %v1236 = vpack.c.b16 %v1224, %v1222
    %v1237 = vpack.c.b16 %v1227, %v1225
    %v1238 = vpack.c.b16 %v1228, %v1226
    %v1239 = vpack.c.b16 %v1231, %v1229
    %v1240 = vpack.c.b16 %v1232, %v1230
    %1249 = vmatprep.subr.bf16.mxu0 0
    %1250 = vmatpush1.bf16.msra.mxu0 0
    %1251 = vmatprep.subr.bf16.mxu0 0
    %1252 = vmatpush1.bf16.msra.mxu0 0
    %1253 = vmatprep.subr.bf16.mxu0 0
    %1254 = vmatpush1.bf16.msra.mxu0 0
    %1255 = vmatprep.subr.bf16.mxu0 0
    %1256 = vmatpush1.bf16.msra.mxu0 0
    %1257 = vmatprep.subr.bf16.mxu0 %v1240
    %1258 = vmatpush1.bf16.msra.mxu0 %v1239
    %1259 = vmatprep.subr.bf16.mxu0 %v1238
    %1260 = vmatpush1.bf16.msra.mxu0 %v1237
    %1261 = vmatprep.subr.bf16.mxu0 %v1236
    %1262 = vmatpush1.bf16.msra.mxu0 %v1235
    %1263 = vmatprep.subr.bf16.mxu0 %v1234
    %1264 = vmatpush1.bf16.msra.mxu0 %v1233
    %1265 = vmatprep.subr.bf16.mxu0 0
    %1266 = vmatpush2.bf16.msra.mxu0 0
    %1267 = vmatprep.subr.bf16.mxu0 0
    %1268 = vmatpush2.bf16.msra.mxu0 0
    %1269 = vmatprep.subr.bf16.mxu0 0
    %1270 = vmatpush2.bf16.msra.mxu0 0
    %1271 = vmatprep.subr.bf16.mxu0 0
    %1272 = vmatpush2.bf16.msra.mxu0 0
    %1273 = vmatprep.subr.bf16.mxu0 0
    %1274 = vmatpush2.bf16.msra.mxu0 0
    %1275 = vmatprep.subr.bf16.mxu0 0
    %1276 = vmatpush2.bf16.msra.mxu0 0
    %1277 = vmatprep.subr.bf16.mxu0 0
    %1278 = vmatpush2.bf16.msra.mxu0 0
    %1279 = vmatprep.subr.bf16.mxu0 0
    %1280 = vmatpush2.bf16.msra.mxu0 0
    %1281 = vmatprep.mubr.bf16.mxu0 0
    %1282 = vmatmul.mubr.bf16.gmra.mxu0 %v310
    %v1283 = vpop.f32.mrf.mxu0
    %v1284 = vadd.f32 0.0, %v1283
    %v1285 = vpop.f32.mrf.mxu0
    %v1286 = vadd.f32 0.0, %v1285
    %v1287 = vpop.f32.mrf.mxu0
    %v1288 = vpop.f32.mrf.mxu0
    %1289 = vdwg.mxu0
    %v1290 = vadd.f32 %v1193, %v1284
    %v1291 = vadd.f32 %v1195, %v1286
    %v1292 = vxor.u32 %v1290, 2147483648
    %v1293 = vxor.u32 %v1291, 2147483648
    %v1294 = vmul.f32 %v1292, 1.442695
    %v1295 = vpow.pop %v1294
    %v1296 = vmul.f32 %v1293, 1.442695
    %v1297 = vpow.pop %v1296
    %v1298 = vadd.f32 %v1295, 1.0
    %v1299 = vadd.f32 %v1297, 1.0
    %v1300 = vrcp.pop %v1298
    %v1301 = vmul.f32 1.0, %v1300
    %v1302 = vrcp.pop %v1299
    %v1303 = vmul.f32 1.0, %v1302
    %v1304 = vtanh.pop %v1291
    %v1305 = vmul.f32 %v1301, 0.0
    %1307 = vrot.lane.b32.xlu0 %v1304, 64
    %v1308 = vpop.permute.xlu0 %1307
    %v1310 = vmul.f32 %v1301, %v1308
    %1312 = vrot.lane.b32.xlu0 %v1310, 64
    %v1313 = vpop.permute.xlu0 %1312
    %v1315 = vadd.f32 %v1305, %v1313
    %v1316 = vtanh.pop %v1315
    %1318 = vrot.lane.b32.xlu0 %v1316, 64
    %v1319 = vpop.permute.xlu0 %1318
    %v1321 = vmul.f32 %v1303, %v1319
    %v1322 = vpack.c.bf16 %v1321, %v1321
    %v1324 = vsel %vm308, %v1322, 0
    %1326 = vmatprep.subr.bf16.mxu0 0
    %1327 = vmatpush1.bf16.msra.mxu0 0
    %1328 = vmatprep.subr.bf16.mxu0 0
    %1329 = vmatpush1.bf16.msra.mxu0 0
    %1330 = vmatprep.subr.bf16.mxu0 0
    %1331 = vmatpush1.bf16.msra.mxu0 0
    %1332 = vmatprep.subr.bf16.mxu0 0
    %1333 = vmatpush1.bf16.msra.mxu0 0
    %1334 = vmatprep.subr.bf16.mxu0 %v1240
    %1335 = vmatpush1.bf16.msra.mxu0 %v1239
    %1336 = vmatprep.subr.bf16.mxu0 %v1238
    %1337 = vmatpush1.bf16.msra.mxu0 %v1237
    %1338 = vmatprep.subr.bf16.mxu0 %v1236
    %1339 = vmatpush1.bf16.msra.mxu0 %v1235
    %1340 = vmatprep.subr.bf16.mxu0 %v1234
    %1341 = vmatpush1.bf16.msra.mxu0 %v1233
    %1342 = vmatprep.subr.bf16.mxu0 0
    %1343 = vmatpush2.bf16.msra.mxu0 0
    %1344 = vmatprep.subr.bf16.mxu0 0
    %1345 = vmatpush2.bf16.msra.mxu0 0
    %1346 = vmatprep.subr.bf16.mxu0 0
    %1347 = vmatpush2.bf16.msra.mxu0 0
    %1348 = vmatprep.subr.bf16.mxu0 0
    %1349 = vmatpush2.bf16.msra.mxu0 0
    %1350 = vmatprep.subr.bf16.mxu0 0
    %1351 = vmatpush2.bf16.msra.mxu0 0
    %1352 = vmatprep.subr.bf16.mxu0 0
    %1353 = vmatpush2.bf16.msra.mxu0 0
    %1354 = vmatprep.subr.bf16.mxu0 0
    %1355 = vmatpush2.bf16.msra.mxu0 0
    %1356 = vmatprep.subr.bf16.mxu0 0
    %1357 = vmatpush2.bf16.msra.mxu0 0
    %1358 = vmatprep.mubr.bf16.mxu0 0
    %1359 = vmatmul.mubr.bf16.gmra.mxu0 %v1324
    %v1360 = vpop.f32.mrf.mxu0
    %v1361 = vadd.f32 0.0, %v1360
    %v1362 = vpop.f32.mrf.mxu0
    %v1363 = vadd.f32 0.0, %v1362
    %v1364 = vpop.f32.mrf.mxu0
    %v1365 = vpop.f32.mrf.mxu0
    %1366 = vdwg.mxu0
    %v1369 = vrot.slane %v1361, 6
    %v1370 = vrot.slane %v1363, 6
    %v1373 = vadd.f32 %v1193, %v1369
    %v1374 = vadd.f32 %v1195, %v1370
    %v1375 = vxor.u32 %v1373, 2147483648
    %v1376 = vxor.u32 %v1374, 2147483648
    %v1377 = vmul.f32 %v1375, 1.442695
    %v1378 = vpow.pop %v1377
    %v1379 = vmul.f32 %v1376, 1.442695
    %v1380 = vpow.pop %v1379
    %v1381 = vadd.f32 %v1378, 1.0
    %v1382 = vadd.f32 %v1380, 1.0
    %v1383 = vrcp.pop %v1381
    %v1384 = vmul.f32 1.0, %v1383
    %v1385 = vrcp.pop %v1382
    %v1386 = vmul.f32 1.0, %v1385
    %v1387 = vtanh.pop %v1374
    %v1389 = vrot.slane %v1315, 6
    %v1391 = vmul.f32 %v1384, %v1389
    %1393 = vrot.lane.b32.xlu0 %v1387, 64
    %v1394 = vpop.permute.xlu0 %1393
    %v1396 = vmul.f32 %v1384, %v1394
    %1398 = vrot.lane.b32.xlu0 %v1396, 64
    %v1399 = vpop.permute.xlu0 %1398
    %v1401 = vadd.f32 %v1391, %v1399
    %v1402 = vtanh.pop %v1401
    %1404 = vrot.lane.b32.xlu0 %v1402, 64
    %v1405 = vpop.permute.xlu0 %1404
    %v1407 = vmul.f32 %v1386, %v1405
    %v1408 = vpack.c.bf16 %v1407, %v1407
    %v1410 = vrot.slane %v1408, 1
    %v1412 = vsel %vm308, %v1410, 0
    %1414 = vmatprep.subr.bf16.mxu0 0
    %1415 = vmatpush1.bf16.msra.mxu0 0
    %1416 = vmatprep.subr.bf16.mxu0 0
    %1417 = vmatpush1.bf16.msra.mxu0 0
    %1418 = vmatprep.subr.bf16.mxu0 0
    %1419 = vmatpush1.bf16.msra.mxu0 0
    %1420 = vmatprep.subr.bf16.mxu0 0
    %1421 = vmatpush1.bf16.msra.mxu0 0
    %1422 = vmatprep.subr.bf16.mxu0 %v1240
    %1423 = vmatpush1.bf16.msra.mxu0 %v1239
    %1424 = vmatprep.subr.bf16.mxu0 %v1238
    %1425 = vmatpush1.bf16.msra.mxu0 %v1237
    %1426 = vmatprep.subr.bf16.mxu0 %v1236
    %1427 = vmatpush1.bf16.msra.mxu0 %v1235
    %1428 = vmatprep.subr.bf16.mxu0 %v1234
    %1429 = vmatpush1.bf16.msra.mxu0 %v1233
    %1430 = vmatprep.subr.bf16.mxu0 0
    %1431 = vmatpush2.bf16.msra.mxu0 0
    %1432 = vmatprep.subr.bf16.mxu0 0
    %1433 = vmatpush2.bf16.msra.mxu0 0
    %1434 = vmatprep.subr.bf16.mxu0 0
    %1435 = vmatpush2.bf16.msra.mxu0 0
    %1436 = vmatprep.subr.bf16.mxu0 0
    %1437 = vmatpush2.bf16.msra.mxu0 0
    %1438 = vmatprep.subr.bf16.mxu0 0
    %1439 = vmatpush2.bf16.msra.mxu0 0
    %1440 = vmatprep.subr.bf16.mxu0 0
    %1441 = vmatpush2.bf16.msra.mxu0 0
    %1442 = vmatprep.subr.bf16.mxu0 0
    %1443 = vmatpush2.bf16.msra.mxu0 0
    %1444 = vmatprep.subr.bf16.mxu0 0
    %1445 = vmatpush2.bf16.msra.mxu0 0
    %1446 = vmatprep.mubr.bf16.mxu0 0
    %1447 = vmatmul.mubr.bf16.gmra.mxu0 %v1412
    %v1448 = vpop.f32.mrf.mxu0
    %v1449 = vadd.f32 0.0, %v1448
    %v1450 = vpop.f32.mrf.mxu0
    %v1451 = vadd.f32 0.0, %v1450
    %v1452 = vpop.f32.mrf.mxu0
    %v1453 = vpop.f32.mrf.mxu0
    %1454 = vdwg.mxu0
    %v1457 = vrot.slane %v1449, 4
    %v1458 = vrot.slane %v1451, 4
    %v1461 = vadd.f32 %v1193, %v1457
    %v1462 = vadd.f32 %v1195, %v1458
    %v1463 = vxor.u32 %v1461, 2147483648
    %v1464 = vxor.u32 %v1462, 2147483648
    %v1465 = vmul.f32 %v1463, 1.442695
    %v1466 = vpow.pop %v1465
    %v1467 = vmul.f32 %v1464, 1.442695
    %v1468 = vpow.pop %v1467
    %v1469 = vadd.f32 %v1466, 1.0
    %v1470 = vadd.f32 %v1468, 1.0
    %v1471 = vrcp.pop %v1469
    %v1472 = vmul.f32 1.0, %v1471
    %v1473 = vrcp.pop %v1470
    %v1474 = vmul.f32 1.0, %v1473
    %v1475 = vtanh.pop %v1462
    %v1477 = vrot.slane %v1401, 6
    %v1479 = vmul.f32 %v1472, %v1477
    %1481 = vrot.lane.b32.xlu0 %v1475, 64
    %v1482 = vpop.permute.xlu0 %1481
    %v1484 = vmul.f32 %v1472, %v1482
    %1486 = vrot.lane.b32.xlu0 %v1484, 64
    %v1487 = vpop.permute.xlu0 %1486
    %v1489 = vadd.f32 %v1479, %v1487
    %v1490 = vtanh.pop %v1489
    %1492 = vrot.lane.b32.xlu0 %v1490, 64
    %v1493 = vpop.permute.xlu0 %1492
    %v1495 = vmul.f32 %v1474, %v1493
    %v1496 = vpack.c.bf16 %v1495, %v1495
    %v1498 = vrot.slane %v1496, 2
    %v1500 = vsel %vm308, %v1498, 0
    %1502 = vmatprep.subr.bf16.mxu0 0
    %1503 = vmatpush1.bf16.msra.mxu0 0
    %1504 = vmatprep.subr.bf16.mxu0 0
    %1505 = vmatpush1.bf16.msra.mxu0 0
    %1506 = vmatprep.subr.bf16.mxu0 0
    %1507 = vmatpush1.bf16.msra.mxu0 0
    %1508 = vmatprep.subr.bf16.mxu0 0
    %1509 = vmatpush1.bf16.msra.mxu0 0
    %1510 = vmatprep.subr.bf16.mxu0 %v1240
    %1511 = vmatpush1.bf16.msra.mxu0 %v1239
    %1512 = vmatprep.subr.bf16.mxu0 %v1238
    %1513 = vmatpush1.bf16.msra.mxu0 %v1237
    %1514 = vmatprep.subr.bf16.mxu0 %v1236
    %1515 = vmatpush1.bf16.msra.mxu0 %v1235
    %1516 = vmatprep.subr.bf16.mxu0 %v1234
    %1517 = vmatpush1.bf16.msra.mxu0 %v1233
    %1518 = vmatprep.subr.bf16.mxu0 0
    %1519 = vmatpush2.bf16.msra.mxu0 0
    %1520 = vmatprep.subr.bf16.mxu0 0
    %1521 = vmatpush2.bf16.msra.mxu0 0
    %1522 = vmatprep.subr.bf16.mxu0 0
    %1523 = vmatpush2.bf16.msra.mxu0 0
    %1524 = vmatprep.subr.bf16.mxu0 0
    %1525 = vmatpush2.bf16.msra.mxu0 0
    %1526 = vmatprep.subr.bf16.mxu0 0
    %1527 = vmatpush2.bf16.msra.mxu0 0
    %1528 = vmatprep.subr.bf16.mxu0 0
    %1529 = vmatpush2.bf16.msra.mxu0 0
    %1530 = vmatprep.subr.bf16.mxu0 0
    %1531 = vmatpush2.bf16.msra.mxu0 0
    %1532 = vmatprep.subr.bf16.mxu0 0
    %1533 = vmatpush2.bf16.msra.mxu0 0
    %1534 = vmatprep.mubr.bf16.mxu0 0
    %1535 = vmatmul.mubr.bf16.gmra.mxu0 %v1500
    %v1536 = vpop.f32.mrf.mxu0
    %v1537 = vadd.f32 0.0, %v1536
    %v1538 = vpop.f32.mrf.mxu0
    %v1539 = vadd.f32 0.0, %v1538
    %v1540 = vpop.f32.mrf.mxu0
    %v1541 = vpop.f32.mrf.mxu0
    %1542 = vdwg.mxu0
    %v1545 = vrot.slane %v1537, 2
    %v1546 = vrot.slane %v1539, 2
    %v1549 = vadd.f32 %v1193, %v1545
    %v1550 = vadd.f32 %v1195, %v1546
    %v1551 = vxor.u32 %v1549, 2147483648
    %v1552 = vxor.u32 %v1550, 2147483648
    %v1553 = vmul.f32 %v1551, 1.442695
    %v1554 = vpow.pop %v1553
    %v1555 = vmul.f32 %v1552, 1.442695
    %v1556 = vpow.pop %v1555
    %v1557 = vadd.f32 %v1554, 1.0
    %v1558 = vadd.f32 %v1556, 1.0
    %v1559 = vrcp.pop %v1557
    %v1560 = vmul.f32 1.0, %v1559
    %v1561 = vrcp.pop %v1558
    %v1562 = vmul.f32 1.0, %v1561
    %v1563 = vtanh.pop %v1550
    %v1565 = vrot.slane %v1489, 6
    %v1567 = vmul.f32 %v1560, %v1565
    %1569 = vrot.lane.b32.xlu0 %v1563, 64
    %v1570 = vpop.permute.xlu0 %1569
    %v1572 = vmul.f32 %v1560, %v1570
    %1574 = vrot.lane.b32.xlu0 %v1572, 64
    %v1575 = vpop.permute.xlu0 %1574
    %v1577 = vadd.f32 %v1567, %v1575
    %v1578 = vtanh.pop %v1577
    %1580 = vrot.lane.b32.xlu0 %v1578, 64
    %v1581 = vpop.permute.xlu0 %1580
    %v1583 = vmul.f32 %v1562, %v1581
    %v1584 = vpack.c.bf16 %v1583, %v1583
    %v1586 = vrot.slane %v1584, 3
    %v1588 = vsel %vm308, %v1586, 0
    %1590 = vmatprep.subr.bf16.mxu0 0
    %1591 = vmatpush1.bf16.msra.mxu0 0
    %1592 = vmatprep.subr.bf16.mxu0 0
    %1593 = vmatpush1.bf16.msra.mxu0 0
    %1594 = vmatprep.subr.bf16.mxu0 0
    %1595 = vmatpush1.bf16.msra.mxu0 0
    %1596 = vmatprep.subr.bf16.mxu0 0
    %1597 = vmatpush1.bf16.msra.mxu0 0
    %1598 = vmatprep.subr.bf16.mxu0 %v1240
    %1599 = vmatpush1.bf16.msra.mxu0 %v1239
    %1600 = vmatprep.subr.bf16.mxu0 %v1238
    %1601 = vmatpush1.bf16.msra.mxu0 %v1237
    %1602 = vmatprep.subr.bf16.mxu0 %v1236
    %1603 = vmatpush1.bf16.msra.mxu0 %v1235
    %1604 = vmatprep.subr.bf16.mxu0 %v1234
    %1605 = vmatpush1.bf16.msra.mxu0 %v1233
    %1606 = vmatprep.subr.bf16.mxu0 0
    %1607 = vmatpush2.bf16.msra.mxu0 0
    %1608 = vmatprep.subr.bf16.mxu0 0
    %1609 = vmatpush2.bf16.msra.mxu0 0
    %1610 = vmatprep.subr.bf16.mxu0 0
    %1611 = vmatpush2.bf16.msra.mxu0 0
    %1612 = vmatprep.subr.bf16.mxu0 0
    %1613 = vmatpush2.bf16.msra.mxu0 0
    %1614 = vmatprep.subr.bf16.mxu0 0
    %1615 = vmatpush2.bf16.msra.mxu0 0
    %1616 = vmatprep.subr.bf16.mxu0 0
    %1617 = vmatpush2.bf16.msra.mxu0 0
    %1618 = vmatprep.subr.bf16.mxu0 0
    %1619 = vmatpush2.bf16.msra.mxu0 0
    %1620 = vmatprep.subr.bf16.mxu0 0
    %1621 = vmatpush2.bf16.msra.mxu0 0
    %1622 = vmatprep.mubr.bf16.mxu0 0
    %1623 = vmatmul.mubr.bf16.gmra.mxu0 %v1588
    %v1624 = vpop.f32.mrf.mxu0
    %v1625 = vadd.f32 0.0, %v1624
    %v1626 = vpop.f32.mrf.mxu0
    %v1627 = vadd.f32 0.0, %v1626
    %v1628 = vpop.f32.mrf.mxu0
    %v1629 = vpop.f32.mrf.mxu0
    %1630 = vdwg.mxu0
    %v1631 = vadd.f32 %v1197, %v1625
    %v1632 = vadd.f32 %v1199, %v1627
    %v1633 = vxor.u32 %v1631, 2147483648
    %v1634 = vxor.u32 %v1632, 2147483648
    %v1635 = vmul.f32 %v1633, 1.442695
    %v1636 = vpow.pop %v1635
    %v1637 = vmul.f32 %v1634, 1.442695
    %v1638 = vpow.pop %v1637
    %v1639 = vadd.f32 %v1636, 1.0
    %v1640 = vadd.f32 %v1638, 1.0
    %v1641 = vrcp.pop %v1639
    %v1642 = vmul.f32 1.0, %v1641
    %v1643 = vrcp.pop %v1640
    %v1644 = vmul.f32 1.0, %v1643
    %v1645 = vtanh.pop %v1632
    %v1647 = vrot.slane %v1577, 6
    %v1649 = vmul.f32 %v1642, %v1647
    %1651 = vrot.lane.b32.xlu0 %v1645, 64
    %v1652 = vpop.permute.xlu0 %1651
    %v1654 = vmul.f32 %v1642, %v1652
    %1656 = vrot.lane.b32.xlu0 %v1654, 64
    %v1657 = vpop.permute.xlu0 %1656
    %v1659 = vadd.f32 %v1649, %v1657
    %v1660 = vtanh.pop %v1659
    %1662 = vrot.lane.b32.xlu0 %v1660, 64
    %v1663 = vpop.permute.xlu0 %1662
    %v1665 = vmul.f32 %v1644, %v1663
    %v1666 = vpack.c.bf16 %v1665, %v1665
    %v1668 = vsel %vm308, %v1666, 0
    %1670 = vmatprep.subr.bf16.mxu0 0
    %1671 = vmatpush1.bf16.msra.mxu0 0
    %1672 = vmatprep.subr.bf16.mxu0 0
    %1673 = vmatpush1.bf16.msra.mxu0 0
    %1674 = vmatprep.subr.bf16.mxu0 0
    %1675 = vmatpush1.bf16.msra.mxu0 0
    %1676 = vmatprep.subr.bf16.mxu0 0
    %1677 = vmatpush1.bf16.msra.mxu0 0
    %1678 = vmatprep.subr.bf16.mxu0 %v1240
    %1679 = vmatpush1.bf16.msra.mxu0 %v1239
    %1680 = vmatprep.subr.bf16.mxu0 %v1238
    %1681 = vmatpush1.bf16.msra.mxu0 %v1237
    %1682 = vmatprep.subr.bf16.mxu0 %v1236
    %1683 = vmatpush1.bf16.msra.mxu0 %v1235
    %1684 = vmatprep.subr.bf16.mxu0 %v1234
    %1685 = vmatpush1.bf16.msra.mxu0 %v1233
    %1686 = vmatprep.subr.bf16.mxu0 0
    %1687 = vmatpush2.bf16.msra.mxu0 0
    %1688 = vmatprep.subr.bf16.mxu0 0
    %1689 = vmatpush2.bf16.msra.mxu0 0
    %1690 = vmatprep.subr.bf16.mxu0 0
    %1691 = vmatpush2.bf16.msra.mxu0 0
    %1692 = vmatprep.subr.bf16.mxu0 0
    %1693 = vmatpush2.bf16.msra.mxu0 0
    %1694 = vmatprep.subr.bf16.mxu0 0
    %1695 = vmatpush2.bf16.msra.mxu0 0
    %1696 = vmatprep.subr.bf16.mxu0 0
    %1697 = vmatpush2.bf16.msra.mxu0 0
    %1698 = vmatprep.subr.bf16.mxu0 0
    %1699 = vmatpush2.bf16.msra.mxu0 0
    %1700 = vmatprep.subr.bf16.mxu0 0
    %1701 = vmatpush2.bf16.msra.mxu0 0
    %1702 = vmatprep.mubr.bf16.mxu0 0
    %1703 = vmatmul.mubr.bf16.gmra.mxu0 %v1668
    %v1704 = vpop.f32.mrf.mxu0
    %v1705 = vadd.f32 0.0, %v1704
    %v1706 = vpop.f32.mrf.mxu0
    %v1707 = vadd.f32 0.0, %v1706
    %v1708 = vpop.f32.mrf.mxu0
    %v1709 = vpop.f32.mrf.mxu0
    %1710 = vdwg.mxu0
    %v1713 = vrot.slane %v1705, 6
    %v1714 = vrot.slane %v1707, 6
    %v1717 = vadd.f32 %v1197, %v1713
    %v1718 = vadd.f32 %v1199, %v1714
    %v1719 = vxor.u32 %v1717, 2147483648
    %v1720 = vxor.u32 %v1718, 2147483648
    %v1721 = vmul.f32 %v1719, 1.442695
    %v1722 = vpow.pop %v1721
    %v1723 = vmul.f32 %v1720, 1.442695
    %v1724 = vpow.pop %v1723
    %v1725 = vadd.f32 %v1722, 1.0
    %v1726 = vadd.f32 %v1724, 1.0
    %v1727 = vrcp.pop %v1725
    %v1728 = vmul.f32 1.0, %v1727
    %v1729 = vrcp.pop %v1726
    %v1730 = vmul.f32 1.0, %v1729
    %v1731 = vtanh.pop %v1718
    %v1733 = vrot.slane %v1659, 6
    %v1735 = vmul.f32 %v1728, %v1733
    %1737 = vrot.lane.b32.xlu0 %v1731, 64
    %v1738 = vpop.permute.xlu0 %1737
    %v1740 = vmul.f32 %v1728, %v1738
    %1742 = vrot.lane.b32.xlu0 %v1740, 64
    %v1743 = vpop.permute.xlu0 %1742
    %v1745 = vadd.f32 %v1735, %v1743
    %v1746 = vtanh.pop %v1745
    %1748 = vrot.lane.b32.xlu0 %v1746, 64
    %v1749 = vpop.permute.xlu0 %1748
    %v1751 = vmul.f32 %v1730, %v1749
    %v1752 = vpack.c.bf16 %v1751, %v1751
    %v1754 = vrot.slane %v1752, 1
    %v1756 = vsel %vm308, %v1754, 0
    %1758 = vmatprep.subr.bf16.mxu0 0
    %1759 = vmatpush1.bf16.msra.mxu0 0
    %1760 = vmatprep.subr.bf16.mxu0 0
    %1761 = vmatpush1.bf16.msra.mxu0 0
    %1762 = vmatprep.subr.bf16.mxu0 0
    %1763 = vmatpush1.bf16.msra.mxu0 0
    %1764 = vmatprep.subr.bf16.mxu0 0
    %1765 = vmatpush1.bf16.msra.mxu0 0
    %1766 = vmatprep.subr.bf16.mxu0 %v1240
    %1767 = vmatpush1.bf16.msra.mxu0 %v1239
    %1768 = vmatprep.subr.bf16.mxu0 %v1238
    %1769 = vmatpush1.bf16.msra.mxu0 %v1237
    %1770 = vmatprep.subr.bf16.mxu0 %v1236
    %1771 = vmatpush1.bf16.msra.mxu0 %v1235
    %1772 = vmatprep.subr.bf16.mxu0 %v1234
    %1773 = vmatpush1.bf16.msra.mxu0 %v1233
    %1774 = vmatprep.subr.bf16.mxu0 0
    %1775 = vmatpush2.bf16.msra.mxu0 0
    %1776 = vmatprep.subr.bf16.mxu0 0
    %1777 = vmatpush2.bf16.msra.mxu0 0
    %1778 = vmatprep.subr.bf16.mxu0 0
    %1779 = vmatpush2.bf16.msra.mxu0 0
    %1780 = vmatprep.subr.bf16.mxu0 0
    %1781 = vmatpush2.bf16.msra.mxu0 0
    %1782 = vmatprep.subr.bf16.mxu0 0
    %1783 = vmatpush2.bf16.msra.mxu0 0
    %1784 = vmatprep.subr.bf16.mxu0 0
    %1785 = vmatpush2.bf16.msra.mxu0 0
    %1786 = vmatprep.subr.bf16.mxu0 0
    %1787 = vmatpush2.bf16.msra.mxu0 0
    %1788 = vmatprep.subr.bf16.mxu0 0
    %1789 = vmatpush2.bf16.msra.mxu0 0
    %1790 = vmatprep.mubr.bf16.mxu0 0
    %1791 = vmatmul.mubr.bf16.gmra.mxu0 %v1756
    %v1792 = vpop.f32.mrf.mxu0
    %v1793 = vadd.f32 0.0, %v1792
    %v1794 = vpop.f32.mrf.mxu0
    %v1795 = vadd.f32 0.0, %v1794
    %v1796 = vpop.f32.mrf.mxu0
    %v1797 = vpop.f32.mrf.mxu0
    %1798 = vdwg.mxu0
    %v1801 = vrot.slane %v1793, 4
    %v1802 = vrot.slane %v1795, 4
    %v1805 = vadd.f32 %v1197, %v1801
    %v1806 = vadd.f32 %v1199, %v1802
    %v1807 = vxor.u32 %v1805, 2147483648
    %v1808 = vxor.u32 %v1806, 2147483648
    %v1809 = vmul.f32 %v1807, 1.442695
    %v1810 = vpow.pop %v1809
    %v1811 = vmul.f32 %v1808, 1.442695
    %v1812 = vpow.pop %v1811
    %v1813 = vadd.f32 %v1810, 1.0
    %v1814 = vadd.f32 %v1812, 1.0
    %v1815 = vrcp.pop %v1813
    %v1816 = vmul.f32 1.0, %v1815
    %v1817 = vrcp.pop %v1814
    %v1818 = vmul.f32 1.0, %v1817
    %v1819 = vtanh.pop %v1806
    %v1821 = vrot.slane %v1745, 6
    %v1823 = vmul.f32 %v1816, %v1821
    %1825 = vrot.lane.b32.xlu0 %v1819, 64
    %v1826 = vpop.permute.xlu0 %1825
    %v1828 = vmul.f32 %v1816, %v1826
    %1830 = vrot.lane.b32.xlu0 %v1828, 64
    %v1831 = vpop.permute.xlu0 %1830
    %v1833 = vadd.f32 %v1823, %v1831
    %v1834 = vtanh.pop %v1833
    %1836 = vrot.lane.b32.xlu0 %v1834, 64
    %v1837 = vpop.permute.xlu0 %1836
    %v1839 = vmul.f32 %v1818, %v1837
    %v1840 = vpack.c.bf16 %v1839, %v1839
    %v1842 = vrot.slane %v1840, 2
    %v1844 = vsel %vm308, %v1842, 0
    %1846 = vmatprep.subr.bf16.mxu0 0
    %1847 = vmatpush1.bf16.msra.mxu0 0
    %1848 = vmatprep.subr.bf16.mxu0 0
    %1849 = vmatpush1.bf16.msra.mxu0 0
    %1850 = vmatprep.subr.bf16.mxu0 0
    %1851 = vmatpush1.bf16.msra.mxu0 0
    %1852 = vmatprep.subr.bf16.mxu0 0
    %1853 = vmatpush1.bf16.msra.mxu0 0
    %1854 = vmatprep.subr.bf16.mxu0 %v1240
    %1855 = vmatpush1.bf16.msra.mxu0 %v1239
    %1856 = vmatprep.subr.bf16.mxu0 %v1238
    %1857 = vmatpush1.bf16.msra.mxu0 %v1237
    %1858 = vmatprep.subr.bf16.mxu0 %v1236
    %1859 = vmatpush1.bf16.msra.mxu0 %v1235
    %1860 = vmatprep.subr.bf16.mxu0 %v1234
    %1861 = vmatpush1.bf16.msra.mxu0 %v1233
    %1862 = vmatprep.subr.bf16.mxu0 0
    %1863 = vmatpush2.bf16.msra.mxu0 0
    %1864 = vmatprep.subr.bf16.mxu0 0
    %1865 = vmatpush2.bf16.msra.mxu0 0
    %1866 = vmatprep.subr.bf16.mxu0 0
    %1867 = vmatpush2.bf16.msra.mxu0 0
    %1868 = vmatprep.subr.bf16.mxu0 0
    %1869 = vmatpush2.bf16.msra.mxu0 0
    %1870 = vmatprep.subr.bf16.mxu0 0
    %1871 = vmatpush2.bf16.msra.mxu0 0
    %1872 = vmatprep.subr.bf16.mxu0 0
    %1873 = vmatpush2.bf16.msra.mxu0 0
    %1874 = vmatprep.subr.bf16.mxu0 0
    %1875 = vmatpush2.bf16.msra.mxu0 0
    %1876 = vmatprep.subr.bf16.mxu0 0
    %1877 = vmatpush2.bf16.msra.mxu0 0
    %1878 = vmatprep.mubr.bf16.mxu0 0
    %1879 = vmatmul.mubr.bf16.gmra.mxu0 %v1844
    %v1880 = vpop.f32.mrf.mxu0
    %v1881 = vadd.f32 0.0, %v1880
    %v1882 = vpop.f32.mrf.mxu0
    %v1883 = vadd.f32 0.0, %v1882
    %v1884 = vpop.f32.mrf.mxu0
    %v1885 = vpop.f32.mrf.mxu0
    %1886 = vdwg.mxu0
    %v1889 = vrot.slane %v1881, 2
    %v1890 = vrot.slane %v1883, 2
    %v1893 = vadd.f32 %v1197, %v1889
    %v1894 = vadd.f32 %v1199, %v1890
    %v1895 = vxor.u32 %v1893, 2147483648
    %v1896 = vxor.u32 %v1894, 2147483648
    %v1897 = vmul.f32 %v1895, 1.442695
    %v1898 = vpow.pop %v1897
    %v1899 = vmul.f32 %v1896, 1.442695
    %v1900 = vpow.pop %v1899
    %v1901 = vadd.f32 %v1898, 1.0
    %v1902 = vadd.f32 %v1900, 1.0
    %v1903 = vrcp.pop %v1901
    %v1904 = vmul.f32 1.0, %v1903
    %v1905 = vrcp.pop %v1902
    %v1906 = vmul.f32 1.0, %v1905
    %v1907 = vtanh.pop %v1894
    %v1909 = vrot.slane %v1833, 6
    %v1911 = vmul.f32 %v1904, %v1909
    %1913 = vrot.lane.b32.xlu0 %v1907, 64
    %v1914 = vpop.permute.xlu0 %1913
    %v1916 = vmul.f32 %v1904, %v1914
    %1918 = vrot.lane.b32.xlu0 %v1916, 64
    %v1919 = vpop.permute.xlu0 %1918
    %v1921 = vadd.f32 %v1911, %v1919
    %v1922 = vtanh.pop %v1921
    %1924 = vrot.lane.b32.xlu0 %v1922, 64
    %v1925 = vpop.permute.xlu0 %1924
    %v1927 = vmul.f32 %v1906, %v1925
    %v1929 = vrot.slane %v1321, 2
    %vm1931 = vcmask 261120
    %v1932 = vsel %vm1931, %v1927, %v1929
    %v1933 = vpack.c.bf16 %v1932, %v1932
    %v1934 = vld [vmem:[%s7] sm:$0xf]
    %v1935 = vld [vmem:[%s7 + $0x4] sm:$0xf]
    %v1936 = vld [vmem:[%s7 + $0x8] sm:$0xf]
    %v1937 = vld [vmem:[%s7 + $0xc] sm:$0xf]
    %v1938 = vld [vmem:[%s7 + $0x10] sm:$0xf]
    %v1939 = vld [vmem:[%s7 + $0x14] sm:$0xf]
    %v1940 = vld [vmem:[%s7 + $0x18] sm:$0xf]
    %v1941 = vld [vmem:[%s7 + $0x1c] sm:$0xf]
    %v1942 = vld [vmem:[#allocation9] sm:$0x1]
    %v1944 = vlaneseq
    %v1945 = vshrl.u32 %v1944, 7
    %v1946 = vsub.s32 0, %v1945
    %v1947 = vrot.slane %v1942, %v1946
    %v1950 = vrot.slane %v1933, 3
    %v1959 = vunpack.c.l.b16 %v1934
    %v1960 = vunpack.c.l.b16 %v1935
    %v1961 = vunpack.c.l.b16 %v1936
    %v1962 = vunpack.c.l.b16 %v1937
    %v1963 = vunpack.c.l.b16 %v1938
    %v1964 = vunpack.c.l.b16 %v1939
    %v1965 = vunpack.c.l.b16 %v1940
    %v1966 = vunpack.c.l.b16 %v1941
    %v1967 = vpack.c.b16 %v1960, %v1959
    %v1968 = vpack.c.b16 %v1962, %v1961
    %v1969 = vpack.c.b16 %v1964, %v1963
    %v1970 = vpack.c.b16 %v1966, %v1965
    %v1976 = vsel %vm308, %v1950, 0
    %1978 = vmatprep.subr.bf16.mxu0 0
    %1979 = vmatpush1.bf16.msra.mxu0 0
    %1980 = vmatprep.subr.bf16.mxu0 0
    %1981 = vmatpush1.bf16.msra.mxu0 0
    %1982 = vmatprep.subr.bf16.mxu0 0
    %1983 = vmatpush1.bf16.msra.mxu0 0
    %1984 = vmatprep.subr.bf16.mxu0 0
    %1985 = vmatpush1.bf16.msra.mxu0 0
    %1986 = vmatprep.subr.bf16.mxu0 0
    %1987 = vmatpush1.bf16.msra.mxu0 %v1970
    %1988 = vmatprep.subr.bf16.mxu0 0
    %1989 = vmatpush1.bf16.msra.mxu0 %v1969
    %1990 = vmatprep.subr.bf16.mxu0 0
    %1991 = vmatpush1.bf16.msra.mxu0 %v1968
    %1992 = vmatprep.subr.bf16.mxu0 0
    %1993 = vmatpush1.bf16.msra.mxu0 %v1967
    %1994 = vmatprep.subr.bf16.mxu0 0
    %1995 = vmatpush2.bf16.msra.mxu0 0
    %1996 = vmatprep.subr.bf16.mxu0 0
    %1997 = vmatpush2.bf16.msra.mxu0 0
    %1998 = vmatprep.subr.bf16.mxu0 0
    %1999 = vmatpush2.bf16.msra.mxu0 0
    %2000 = vmatprep.subr.bf16.mxu0 0
    %2001 = vmatpush2.bf16.msra.mxu0 0
    %2002 = vmatprep.subr.bf16.mxu0 0
    %2003 = vmatpush2.bf16.msra.mxu0 0
    %2004 = vmatprep.subr.bf16.mxu0 0
    %2005 = vmatpush2.bf16.msra.mxu0 0
    %2006 = vmatprep.subr.bf16.mxu0 0
    %2007 = vmatpush2.bf16.msra.mxu0 0
    %2008 = vmatprep.subr.bf16.mxu0 0
    %2009 = vmatpush2.bf16.msra.mxu0 0
    %2010 = vmatprep.mubr.bf16.mxu0 0
    %2011 = vmatmul.mubr.bf16.gmra.mxu0 %v1976
    %v2012 = vpop.f32.mrf.mxu0
    %v2013 = vadd.f32 %v1947, %v2012
    %v2014 = vpop.f32.mrf.mxu0
    %v2015 = vpop.f32.mrf.mxu0
    %v2016 = vpop.f32.mrf.mxu0
    %2017 = vdwg.mxu0
    %v2018 = vxor.u32 %v2013, 2147483648
    %v2019 = vmul.f32 %v2018, 1.442695
    %v2020 = vpow.pop %v2019
    %v2021 = vadd.f32 %v2020, 1.0
    %v2022 = vrcp.pop %v2021
    %v2023 = vmul.f32 1.0, %v2022
    %vm2024 = vcmask 25600
    %2025 = vst.msk [vmem:[#allocation11] sm:$0x3] %vm2024, %v2023
    // Predicated region
    $region54: #{model_forward.1} parent=1 // pred_check
      _
    $region55: #{model_forward.1} parent=1 // pred_check_branch
      %2027 = sbr.rel (0) target = $region57
    $region56: #{model_forward.1} parent=1 // pred_region
      %s2029 = ssub.s32 32, 32
      %2030 = vsyncadd [#allocation5], %s2029
      %s2032 = sshll.u32 [#allocation11], 4
      %s2033 = int_to_ptr.vmem [resolvable:$true] %s2032
      %2035 = dma.vmem_to_hbm [thread:$0]  %s2033, 32, %s9, [#allocation5]
    $region57: #{model_forward.1} parent=1 // pred_fallthru
      _
    // Predicated region
    $region58: #{model_forward.1} parent=1 // pred_check
      _
    $region59: #{model_forward.1} parent=1 // pred_check_branch
      %2037 = sbr.rel (0) target = $region61
    $region60: #{model_forward.1} parent=1 // pred_region
      %2038 = dma.done [#allocation5], 32
    $region61: #{model_forward.1} parent=1 // pred_fallthru
      _
    %2039 = vsyncpa [#allocation4], 1
    %2040 = vsyncpa [#allocation7], 1
    %2041 = vsyncpa [#allocation10], 1
    %2042 = vsyncpa [#allocation5], 1

</llo_original>
